<compile_context>
chip_gen: v7x
topology: tpu7x:2x2x1
jax: 0.10.0
libtpu: 0.0.40
codegen_flags: <defaults>
</compile_context>

<pallas_src>
import math

import jax
import jax.numpy as jnp
from jax.experimental import pallas as pl
from jax.experimental.pallas import tpu as pltpu


# ----------------------------- config ---------------------------------------
BATCH = 2
SEQ = 8
HIDDEN = 32
NUM_HEADS = 2
HEAD_DIM = HIDDEN // NUM_HEADS
INTERMEDIATE = 64
NUM_LAYERS = 2
VOCAB = 64
MAX_POS = 16
TYPE_VOCAB = 2
NUM_CLASSES = 2
OUT_PAD = 128          # lane-dense padded classifier width (>= NUM_CLASSES)
OUT_ROWS = 8           # sublane-aligned number of output rows (>= BATCH)
LN_EPS = 1e-12         # BERT default
ROWS = BATCH * SEQ
NEG_INF = -1e4

# --- packed-parameter row offsets (all multiples of 8 -> aligned row slices) --
# "narrow" slab: every 32-lane-wide matrix stacked along rows.
WORD_OFF = 0
POSTYPE_OFF = WORD_OFF + VOCAB                       # 64
WO_OFF = POSTYPE_OFF + SEQ                           # 72
W2_OFF = WO_OFF + NUM_LAYERS * HIDDEN                # 136
POOL_OFF = W2_OFF + NUM_LAYERS * INTERMEDIATE        # 264
NARROW_ROWS = POOL_OFF + HIDDEN                      # 296

# "vecs" slab: every [1, N] bias / LayerNorm vector zero-padded to 128 lanes.
VEC_EMB_G = 0
VEC_EMB_B = 1
VEC_LAYER = 2          # 8 rows per layer: bqkv, bo, ln1g, ln1b, b1, b2, ln2g, ln2b
VEC_POOL_B = VEC_LAYER + 8 * NUM_LAYERS              # 18
VEC_FC_B = VEC_POOL_B + 1                            # 19
VEC_ROWS = VEC_FC_B + 1                              # 20


# ----------------------------- fused Pallas kernel ---------------------------
def fused_bert_kernel(ids_ref, am_ref, narrow_ref, wqkv_ref, w1_ref, fcw_ref,
                      vecs_ref, out_ref):
    """Whole forward pass on VMEM-resident data.

    ids:[B*S,1] int32   am:[1,B*S] f32 (1=keep, 0=pad)
    narrow:[296,32]  wqkv:[64,96]  w1:[64,64]  fcw:[32,128]  vecs:[20,128]
    out:[8,128] (sigmoid probs; only rows < BATCH / first NUM_CLASSES lanes used)
    """
    f32 = jnp.float32

    def vec(row, width):                       # [1, width] bias / LN row
        return vecs_ref[row:row + 1, 0:width]

    def layernorm(v, g_row, b_row):
        mu = jnp.mean(v, axis=-1, keepdims=True)
        var = jnp.mean((v - mu) * (v - mu), axis=-1, keepdims=True)
        return ((v - mu) * jax.lax.rsqrt(var + LN_EPS) * vec(g_row, HIDDEN)
                + vec(b_row, HIDDEN))

    def gelu(v):
        # TODO(synk): HF BERT uses exact erf-GELU; tanh approximation kept for
        # guaranteed Mosaic lowering (only matters for exact numeric parity).
        return 0.5 * v * (1.0 + jnp.tanh(0.7978845608028654 *
                                         (v + 0.044715 * v * v * v)))

    # ---- embeddings: one-hot gather (one MXU pass) + pos/type + LayerNorm ----
    ids = ids_ref[...]                                                   # [R,1]
    onehot = (jax.lax.broadcasted_iota(jnp.int32, (ROWS, VOCAB), 1)
              == ids).astype(f32)                                        # [R,V]
    word_tab = narrow_ref[WORD_OFF:WORD_OFF + VOCAB, :]                  # [V,H]
    pos_type = narrow_ref[POSTYPE_OFF:POSTYPE_OFF + SEQ, :]              # [S,H]
    x = jnp.dot(onehot, word_tab, preferred_element_type=f32)            # [R,H]
    x = x + jnp.concatenate([pos_type] * BATCH, axis=0)
    x = layernorm(x, VEC_EMB_G, VEC_EMB_B)
    # (token_type_ids are all zeros -> type-0 embedding folded into pos_type.)

    # ---- additive attention mask built in-kernel: one [R,R] tile masking
    #      cross-batch pairs and padded keys; batch is folded into the score
    #      matrix so there is no per-batch attention loop. ----
    ri = jax.lax.broadcasted_iota(jnp.int32, (ROWS, ROWS), 0)
    ci = jax.lax.broadcasted_iota(jnp.int32, (ROWS, ROWS), 1)
    same_batch = None
    for b in range(BATCH):
        blk = ((ri >= b * SEQ) & (ri < (b + 1) * SEQ)
               & (ci >= b * SEQ) & (ci < (b + 1) * SEQ))
        same_batch = blk if same_batch is None else (same_batch | blk)
    key_ok = am_ref[...] > 0.5                                           # [1,R]
    add_mask = jnp.where(same_batch & key_ok, 0.0, NEG_INF)              # [R,R]

    scale = 1.0 / math.sqrt(HEAD_DIM)

    # ---- transformer layers (statically unrolled: NUM_LAYERS = 2) ----
    for li in range(NUM_LAYERS):
        vb = VEC_LAYER + 8 * li
        wqkv = wqkv_ref[li * HIDDEN:(li + 1) * HIDDEN, :]                # [H,3H]
        qkv = (jnp.dot(x, wqkv, preferred_element_type=f32)
               + vec(vb + 0, 3 * HIDDEN))                                # [R,3H]

        # Self-attention: batch handled by add_mask; only the 2-head loop
        # remains.  Output projection folded into the loop, accumulated as a
        # value (no VMEM scratch, no masked stores).
        attn = jnp.zeros((ROWS, HIDDEN), f32)
        for h in range(NUM_HEADS):
            c = h * HEAD_DIM
            q = qkv[:, c:c + HEAD_DIM]                                   # [R,Dh]
            k = qkv[:, HIDDEN + c:HIDDEN + c + HEAD_DIM]                 # [R,Dh]
            v = qkv[:, 2 * HIDDEN + c:2 * HIDDEN + c + HEAD_DIM]         # [R,Dh]
            s = jax.lax.dot_general(q, k, (((1,), (1,)), ((), ())),
                                    preferred_element_type=f32)          # [R,R]
            s = s * scale + add_mask
            m = jnp.max(s, axis=-1, keepdims=True)
            p = jnp.exp(s - m)
            p = p / jnp.sum(p, axis=-1, keepdims=True)   # exact softmax denom
            ctx = jnp.dot(p, v, preferred_element_type=f32)              # [R,Dh]
            wo_h = narrow_ref[WO_OFF + li * HIDDEN + c:
                              WO_OFF + li * HIDDEN + c + HEAD_DIM, :]    # [Dh,H]
            attn = attn + jnp.dot(ctx, wo_h, preferred_element_type=f32)
        attn = attn + vec(vb + 1, HIDDEN)
        x = layernorm(x + attn, vb + 2, vb + 3)

        # Feed-forward.
        w1 = w1_ref[li * HIDDEN:(li + 1) * HIDDEN, :]                    # [H,I]
        h1 = gelu(jnp.dot(x, w1, preferred_element_type=f32)
                  + vec(vb + 4, INTERMEDIATE))
        w2 = narrow_ref[W2_OFF + li * INTERMEDIATE:
                        W2_OFF + (li + 1) * INTERMEDIATE, :]             # [I,H]
        ffn = jnp.dot(h1, w2, preferred_element_type=f32) + vec(vb + 5, HIDDEN)
        x = layernorm(x + ffn, vb + 6, vb + 7)

    # ---- pooler + classifier on the CLS rows only.  CLS rows are gathered by
    #      a tiny selection matmul; rows >= BATCH of the output are unused.
    #      The single HBM store is a lane-dense, unmasked [8,128] tile. ----
    sel = (jax.lax.broadcasted_iota(jnp.int32, (OUT_ROWS, ROWS), 1)
           == SEQ * jax.lax.broadcasted_iota(jnp.int32, (OUT_ROWS, ROWS), 0)
           ).astype(f32)                                                 # [8,R]
    x_cls = jnp.dot(sel, x, preferred_element_type=f32)                  # [8,H]
    pool_w = narrow_ref[POOL_OFF:POOL_OFF + HIDDEN, :]                   # [H,H]
    pooled = jnp.tanh(jnp.dot(x_cls, pool_w, preferred_element_type=f32)
                      + vec(VEC_POOL_B, HIDDEN))
    # Dropout(p=0.1) before the classifier is identity at inference.
    logits = (jnp.dot(pooled, fcw_ref[...], preferred_element_type=f32)
              + vec(VEC_FC_B, OUT_PAD))                                  # [8,128]
    # sigmoid(x) = 0.5*(1 + tanh(x/2)): one EUP op, no f32 divide.
    out_ref[...] = 0.5 * (1.0 + jnp.tanh(0.5 * logits))


_VMEM = pl.BlockSpec(memory_space=pltpu.MemorySpace.VMEM)

_fused_call = pl.pallas_call(
    fused_bert_kernel,
    out_shape=jax.ShapeDtypeStruct((OUT_ROWS, OUT_PAD), jnp.float32),
    in_specs=[_VMEM] * 7,
    out_specs=_VMEM,
)
# NOTE(v7x): single-TC by design at BATCH=2/SEQ=8; if the workload scales, add
# a batch grid axis with dimension_semantics=("parallel",) to use both cores.


# ----------------------------- parameters ------------------------------------
def init_params(key):
    def w(k, shape):
        return 0.02 * jax.random.normal(k, shape, jnp.float32)

    keys = jax.random.split(key, 6 + NUM_LAYERS)

    word_emb = w(keys[0], (VOCAB, HIDDEN))
    pos_emb = w(keys[1], (MAX_POS, HIDDEN))
    type_emb = w(keys[2], (TYPE_VOCAB, HIDDEN))
    pool_w = w(keys[3], (HIDDEN, HIDDEN))
    fc_w_core = w(keys[4], (HIDDEN, NUM_CLASSES))

    # token_type_ids are all zeros for this model -> fold the type-0 embedding
    # into the (static, length-SEQ) positional rows.
    pos_type = pos_emb[:SEQ] + type_emb[0][None, :]                      # [S,H]

    wqkv, w1, wo, w2 = [], [], [], []
    for li in range(NUM_LAYERS):
        lk = jax.random.split(keys[6 + li], 6)
        wq = w(lk[0], (HIDDEN, HIDDEN))
        wk = w(lk[1], (HIDDEN, HIDDEN))
        wv = w(lk[2], (HIDDEN, HIDDEN))
        wqkv.append(jnp.concatenate([wq, wk, wv], axis=1))               # [H,3H]
        wo.append(w(lk[3], (HIDDEN, HIDDEN)))
        w1.append(w(lk[4], (HIDDEN, INTERMEDIATE)))
        w2.append(w(lk[5], (INTERMEDIATE, HIDDEN)))

    # ---- packed slabs: 5 parameter inputs (7 kernel inputs total vs 20) ----
    narrow = jnp.concatenate([word_emb, pos_type] + wo + w2 + [pool_w], axis=0)
    assert narrow.shape == (NARROW_ROWS, HIDDEN)
    wqkv_slab = jnp.concatenate(wqkv, axis=0)                            # [L*H,3H]
    w1_slab = jnp.concatenate(w1, axis=0)                                # [L*H,I]
    fcw = jnp.zeros((HIDDEN, OUT_PAD), jnp.float32).at[:, :NUM_CLASSES].set(
        fc_w_core)

    def vrow(vals):
        vals = jnp.asarray(vals, jnp.float32)
        return jnp.zeros((1, OUT_PAD), jnp.float32).at[0, :vals.shape[0]].set(vals)

    vec_rows = [vrow(jnp.ones(HIDDEN)), vrow(jnp.zeros(HIDDEN))]         # emb LN
    for _ in range(NUM_LAYERS):
        vec_rows += [
            vrow(jnp.zeros(3 * HIDDEN)),      # bqkv
            vrow(jnp.zeros(HIDDEN)),          # bo
            vrow(jnp.ones(HIDDEN)),           # ln1 gamma
            vrow(jnp.zeros(HIDDEN)),          # ln1 beta
            vrow(jnp.zeros(INTERMEDIATE)),    # b1
            vrow(jnp.zeros(HIDDEN)),          # b2
            vrow(jnp.ones(HIDDEN)),           # ln2 gamma
            vrow(jnp.zeros(HIDDEN)),          # ln2 beta
        ]
    vec_rows += [vrow(jnp.zeros(HIDDEN)),     # pooler bias
                 vrow(jnp.zeros(NUM_CLASSES))]  # classifier bias (padded)
    vecs = jnp.concatenate(vec_rows, axis=0)
    assert vecs.shape == (VEC_ROWS, OUT_PAD)

    return {"narrow": narrow, "wqkv": wqkv_slab, "w1": w1_slab,
            "fcw": fcw, "vecs": vecs}


# ----------------------------- forward pass -----------------------------------
@jax.jit
def forward(params, input_ids, attention_mask):
    """Mirrors DummyTransformerModel.forward (eval mode)."""
    b, s = input_ids.shape
    ids_col = input_ids.reshape(b * s, 1).astype(jnp.int32)              # [R,1]
    am_row = attention_mask.reshape(1, b * s).astype(jnp.float32)        # [1,R]
    probs_pad = _fused_call(ids_col, am_row, params["narrow"], params["wqkv"],
                            params["w1"], params["fcw"], params["vecs"])
    return probs_pad[:b, :NUM_CLASSES]


# ----------------------------- main -------------------------------------------
if __name__ == "__main__":
    key = jax.random.PRNGKey(0)
    pkey, ikey = jax.random.split(key)

    params = init_params(pkey)

    # synthetic tokenized batch: 2 sentences, seq_len 8, second one padded.
    input_ids = jax.random.randint(ikey, (BATCH, SEQ), 1, VOCAB, dtype=jnp.int32)
    attention_mask = jnp.array(
        [[1, 1, 1, 1, 1, 1, 1, 1],
         [1, 1, 1, 1, 1, 0, 0, 0]], dtype=jnp.int32)
    input_ids = input_ids * attention_mask  # pad token id 0 on masked positions

    probs = forward(params, input_ids, attention_mask)
    jax.block_until_ready(probs)

    assert probs.shape == (BATCH, NUM_CLASSES)
    assert bool(jnp.all((probs >= 0.0) & (probs <= 1.0)))
    print("KERNEL_OK")
</pallas_src>

<mosaic_0001>
module attributes {stable_mosaic.version = 11 : i64} {
  func.func @fused_bert_kernel(%arg0: memref<16x1xi32, #tpu.memory_space<vmem>>, %arg1: memref<1x16xf32, #tpu.memory_space<vmem>>, %arg2: memref<296x32xf32, #tpu.memory_space<vmem>>, %arg3: memref<64x96xf32, #tpu.memory_space<vmem>>, %arg4: memref<64x64xf32, #tpu.memory_space<vmem>>, %arg5: memref<32x128xf32, #tpu.memory_space<vmem>>, %arg6: memref<20x128xf32, #tpu.memory_space<vmem>>, %arg7: memref<8x128xf32, #tpu.memory_space<vmem>>) attributes {dimension_semantics = [], scalar_prefetch = 0 : i64, scratch_operands = 0 : i64, tpu.core_type = #tpu.core_type<tc>} {
    %c0 = arith.constant 0 : index
    %c0_0 = arith.constant 0 : index
    %0 = vector.load %arg0[%c0, %c0_0] : memref<16x1xi32, #tpu.memory_space<vmem>>, vector<16x1xi32>
    %1 = tpu.iota {dimensions = array<i32: 1>} : vector<16x64xi32>
    %2 = vector.broadcast %0 : vector<16x1xi32> to vector<16x64xi32>
    %3 = arith.cmpi eq, %1, %2 : vector<16x64xi32>
    %4 = arith.extui %3 : vector<16x64xi1> to vector<16x64xi32>
    %5 = arith.sitofp %4 : vector<16x64xi32> to vector<16x64xf32>
    %c0_1 = arith.constant 0 : index
    %c0_2 = arith.constant 0 : index
    %6 = vector.load %arg2[%c0_1, %c0_2] : memref<296x32xf32, #tpu.memory_space<vmem>>, vector<64x32xf32>
    %c64 = arith.constant 64 : index
    %c0_3 = arith.constant 0 : index
    %7 = vector.load %arg2[%c64, %c0_3] : memref<296x32xf32, #tpu.memory_space<vmem>>, vector<8x32xf32>
    %cst = arith.constant dense<0.000000e+00> : vector<16x32xf32>
    %8 = tpu.matmul %5, %6, %cst {dimension_numbers = #tpu.dot_dimension_numbers<[1], [0], [0], [1], [0, 0, 1, 1], [], []>} : vector<16x64xf32>, vector<64x32xf32>, vector<16x32xf32> -> vector<16x32xf32>
    %9 = tpu.concatenate %7, %7 in 0 : vector<8x32xf32>, vector<8x32xf32> -> vector<16x32xf32>
    %10 = arith.addf %8, %9 : vector<16x32xf32>
    %cst_4 = arith.constant dense<0.000000e+00> : vector<16xf32>
    %11 = vector.multi_reduction <add>, %10, %cst_4 [1] : vector<16x32xf32> to vector<16xf32>
    %12 = vector.shape_cast %11 : vector<16xf32> to vector<16x1xf32>
    %cst_5 = arith.constant 3.200000e+01 : f32
    %13 = vector.broadcast %cst_5 : f32 to vector<16x1xf32>
    %14 = arith.divf %12, %13 : vector<16x1xf32>
    %15 = vector.broadcast %14 : vector<16x1xf32> to vector<16x32xf32>
    %16 = arith.subf %10, %15 : vector<16x32xf32>
    %17 = vector.broadcast %14 : vector<16x1xf32> to vector<16x32xf32>
    %18 = arith.subf %10, %17 : vector<16x32xf32>
    %19 = arith.mulf %16, %18 : vector<16x32xf32>
    %cst_6 = arith.constant dense<0.000000e+00> : vector<16xf32>
    %20 = vector.multi_reduction <add>, %19, %cst_6 [1] : vector<16x32xf32> to vector<16xf32>
    %21 = vector.shape_cast %20 : vector<16xf32> to vector<16x1xf32>
    %cst_7 = arith.constant 3.200000e+01 : f32
    %22 = vector.broadcast %cst_7 : f32 to vector<16x1xf32>
    %23 = arith.divf %21, %22 : vector<16x1xf32>
    %24 = vector.broadcast %14 : vector<16x1xf32> to vector<16x32xf32>
    %25 = arith.subf %10, %24 : vector<16x32xf32>
    %cst_8 = arith.constant 9.99999996E-13 : f32
    %26 = vector.broadcast %cst_8 : f32 to vector<16x1xf32>
    %27 = arith.addf %23, %26 : vector<16x1xf32>
    %28 = math.rsqrt %27 : vector<16x1xf32>
    %29 = vector.broadcast %28 : vector<16x1xf32> to vector<16x32xf32>
    %30 = arith.mulf %25, %29 : vector<16x32xf32>
    %c0_9 = arith.constant 0 : index
    %c0_10 = arith.constant 0 : index
    %31 = vector.load %arg6[%c0_9, %c0_10] : memref<20x128xf32, #tpu.memory_space<vmem>>, vector<1x32xf32>
    %32 = vector.broadcast %31 : vector<1x32xf32> to vector<16x32xf32>
    %33 = arith.mulf %30, %32 : vector<16x32xf32>
    %c1 = arith.constant 1 : index
    %c0_11 = arith.constant 0 : index
    %34 = vector.load %arg6[%c1, %c0_11] : memref<20x128xf32, #tpu.memory_space<vmem>>, vector<1x32xf32>
    %35 = vector.broadcast %34 : vector<1x32xf32> to vector<16x32xf32>
    %36 = arith.addf %33, %35 : vector<16x32xf32>
    %37 = tpu.iota {dimensions = array<i32: 0>} : vector<16x16xi32>
    %38 = tpu.iota {dimensions = array<i32: 1>} : vector<16x16xi32>
    %c0_i32 = arith.constant 0 : i32
    %39 = vector.broadcast %c0_i32 : i32 to vector<16x16xi32>
    %40 = arith.cmpi sge, %37, %39 : vector<16x16xi32>
    %c8_i32 = arith.constant 8 : i32
    %41 = vector.broadcast %c8_i32 : i32 to vector<16x16xi32>
    %42 = arith.cmpi slt, %37, %41 : vector<16x16xi32>
    %43 = arith.andi %40, %42 : vector<16x16xi1>
    %c0_i32_12 = arith.constant 0 : i32
    %44 = vector.broadcast %c0_i32_12 : i32 to vector<16x16xi32>
    %45 = arith.cmpi sge, %38, %44 : vector<16x16xi32>
    %46 = arith.andi %43, %45 : vector<16x16xi1>
    %c8_i32_13 = arith.constant 8 : i32
    %47 = vector.broadcast %c8_i32_13 : i32 to vector<16x16xi32>
    %48 = arith.cmpi slt, %38, %47 : vector<16x16xi32>
    %49 = arith.andi %46, %48 : vector<16x16xi1>
    %c8_i32_14 = arith.constant 8 : i32
    %50 = vector.broadcast %c8_i32_14 : i32 to vector<16x16xi32>
    %51 = arith.cmpi sge, %37, %50 : vector<16x16xi32>
    %c16_i32 = arith.constant 16 : i32
    %52 = vector.broadcast %c16_i32 : i32 to vector<16x16xi32>
    %53 = arith.cmpi slt, %37, %52 : vector<16x16xi32>
    %54 = arith.andi %51, %53 : vector<16x16xi1>
    %c8_i32_15 = arith.constant 8 : i32
    %55 = vector.broadcast %c8_i32_15 : i32 to vector<16x16xi32>
    %56 = arith.cmpi sge, %38, %55 : vector<16x16xi32>
    %57 = arith.andi %54, %56 : vector<16x16xi1>
    %c16_i32_16 = arith.constant 16 : i32
    %58 = vector.broadcast %c16_i32_16 : i32 to vector<16x16xi32>
    %59 = arith.cmpi slt, %38, %58 : vector<16x16xi32>
    %60 = arith.andi %57, %59 : vector<16x16xi1>
    %61 = arith.ori %49, %60 : vector<16x16xi1>
    %c0_17 = arith.constant 0 : index
    %c0_18 = arith.constant 0 : index
    %62 = vector.load %arg1[%c0_17, %c0_18] : memref<1x16xf32, #tpu.memory_space<vmem>>, vector<1x16xf32>
    %cst_19 = arith.constant 5.000000e-01 : f32
    %63 = vector.broadcast %cst_19 : f32 to vector<1x16xf32>
    %64 = arith.cmpf ogt, %62, %63 : vector<1x16xf32>
    %65 = vector.broadcast %64 : vector<1x16xi1> to vector<16x16xi1>
    %66 = arith.andi %61, %65 : vector<16x16xi1>
    %cst_20 = arith.constant 0.000000e+00 : f32
    %cst_21 = arith.constant -1.000000e+04 : f32
    %67 = vector.broadcast %cst_20 : f32 to vector<16x16xf32>
    %68 = vector.broadcast %cst_21 : f32 to vector<16x16xf32>
    %69 = arith.select %66, %67, %68 : vector<16x16xi1>, vector<16x16xf32>
    %c0_22 = arith.constant 0 : index
    %c0_23 = arith.constant 0 : index
    %70 = vector.load %arg3[%c0_22, %c0_23] : memref<64x96xf32, #tpu.memory_space<vmem>>, vector<32x96xf32>
    %cst_24 = arith.constant dense<0.000000e+00> : vector<16x96xf32>
    %71 = tpu.matmul %36, %70, %cst_24 {dimension_numbers = #tpu.dot_dimension_numbers<[1], [0], [0], [1], [0, 0, 1, 1], [], []>} : vector<16x32xf32>, vector<32x96xf32>, vector<16x96xf32> -> vector<16x96xf32>
    %c2 = arith.constant 2 : index
    %c0_25 = arith.constant 0 : index
    %72 = vector.load %arg6[%c2, %c0_25] : memref<20x128xf32, #tpu.memory_space<vmem>>, vector<1x96xf32>
    %73 = vector.broadcast %72 : vector<1x96xf32> to vector<16x96xf32>
    %74 = arith.addf %71, %73 : vector<16x96xf32>
    %cst_26 = arith.constant 0.000000e+00 : f32
    %75 = vector.broadcast %cst_26 : f32 to vector<16x32xf32>
    %76 = vector.extract_strided_slice %74 {offsets = [0, 0], sizes = [16, 16], strides = [1, 1]} : vector<16x96xf32> to vector<16x16xf32>
    %77 = vector.extract_strided_slice %74 {offsets = [0, 32], sizes = [16, 16], strides = [1, 1]} : vector<16x96xf32> to vector<16x16xf32>
    %78 = vector.extract_strided_slice %74 {offsets = [0, 64], sizes = [16, 16], strides = [1, 1]} : vector<16x96xf32> to vector<16x16xf32>
    %cst_27 = arith.constant dense<0.000000e+00> : vector<16x16xf32>
    %79 = tpu.matmul %76, %77, %cst_27 {dimension_numbers = #tpu.dot_dimension_numbers<[1], [1], [0], [0], [0, 0, 1, 0], [], []>} : vector<16x16xf32>, vector<16x16xf32>, vector<16x16xf32> -> vector<16x16xf32>
    %cst_28 = arith.constant 2.500000e-01 : f32
    %80 = vector.broadcast %cst_28 : f32 to vector<16x16xf32>
    %81 = arith.mulf %79, %80 : vector<16x16xf32>
    %82 = arith.addf %81, %69 : vector<16x16xf32>
    %cst_29 = arith.constant dense<0xFF800000> : vector<16xf32>
    %83 = vector.multi_reduction <maximumf>, %82, %cst_29 [1] : vector<16x16xf32> to vector<16xf32>
    %84 = vector.shape_cast %83 : vector<16xf32> to vector<16x1xf32>
    %85 = vector.broadcast %84 : vector<16x1xf32> to vector<16x16xf32>
    %86 = arith.subf %82, %85 : vector<16x16xf32>
    %87 = math.exp %86 : vector<16x16xf32>
    %cst_30 = arith.constant dense<0.000000e+00> : vector<16xf32>
    %88 = vector.multi_reduction <add>, %87, %cst_30 [1] : vector<16x16xf32> to vector<16xf32>
    %89 = vector.shape_cast %88 : vector<16xf32> to vector<16x1xf32>
    %90 = vector.broadcast %89 : vector<16x1xf32> to vector<16x16xf32>
    %91 = arith.divf %87, %90 : vector<16x16xf32>
    %cst_31 = arith.constant dense<0.000000e+00> : vector<16x16xf32>
    %92 = tpu.matmul %91, %78, %cst_31 {dimension_numbers = #tpu.dot_dimension_numbers<[1], [0], [0], [1], [0, 0, 1, 1], [], []>} : vector<16x16xf32>, vector<16x16xf32>, vector<16x16xf32> -> vector<16x16xf32>
    %c72 = arith.constant 72 : index
    %c0_32 = arith.constant 0 : index
    %93 = vector.load %arg2[%c72, %c0_32] : memref<296x32xf32, #tpu.memory_space<vmem>>, vector<16x32xf32>
    %cst_33 = arith.constant dense<0.000000e+00> : vector<16x32xf32>
    %94 = tpu.matmul %92, %93, %cst_33 {dimension_numbers = #tpu.dot_dimension_numbers<[1], [0], [0], [1], [0, 0, 1, 1], [], []>} : vector<16x16xf32>, vector<16x32xf32>, vector<16x32xf32> -> vector<16x32xf32>
    %95 = arith.addf %75, %94 : vector<16x32xf32>
    %96 = vector.extract_strided_slice %74 {offsets = [0, 16], sizes = [16, 16], strides = [1, 1]} : vector<16x96xf32> to vector<16x16xf32>
    %97 = vector.extract_strided_slice %74 {offsets = [0, 48], sizes = [16, 16], strides = [1, 1]} : vector<16x96xf32> to vector<16x16xf32>
    %98 = vector.extract_strided_slice %74 {offsets = [0, 80], sizes = [16, 16], strides = [1, 1]} : vector<16x96xf32> to vector<16x16xf32>
    %cst_34 = arith.constant dense<0.000000e+00> : vector<16x16xf32>
    %99 = tpu.matmul %96, %97, %cst_34 {dimension_numbers = #tpu.dot_dimension_numbers<[1], [1], [0], [0], [0, 0, 1, 0], [], []>} : vector<16x16xf32>, vector<16x16xf32>, vector<16x16xf32> -> vector<16x16xf32>
    %cst_35 = arith.constant 2.500000e-01 : f32
    %100 = vector.broadcast %cst_35 : f32 to vector<16x16xf32>
    %101 = arith.mulf %99, %100 : vector<16x16xf32>
    %102 = arith.addf %101, %69 : vector<16x16xf32>
    %cst_36 = arith.constant dense<0xFF800000> : vector<16xf32>
    %103 = vector.multi_reduction <maximumf>, %102, %cst_36 [1] : vector<16x16xf32> to vector<16xf32>
    %104 = vector.shape_cast %103 : vector<16xf32> to vector<16x1xf32>
    %105 = vector.broadcast %104 : vector<16x1xf32> to vector<16x16xf32>
    %106 = arith.subf %102, %105 : vector<16x16xf32>
    %107 = math.exp %106 : vector<16x16xf32>
    %cst_37 = arith.constant dense<0.000000e+00> : vector<16xf32>
    %108 = vector.multi_reduction <add>, %107, %cst_37 [1] : vector<16x16xf32> to vector<16xf32>
    %109 = vector.shape_cast %108 : vector<16xf32> to vector<16x1xf32>
    %110 = vector.broadcast %109 : vector<16x1xf32> to vector<16x16xf32>
    %111 = arith.divf %107, %110 : vector<16x16xf32>
    %cst_38 = arith.constant dense<0.000000e+00> : vector<16x16xf32>
    %112 = tpu.matmul %111, %98, %cst_38 {dimension_numbers = #tpu.dot_dimension_numbers<[1], [0], [0], [1], [0, 0, 1, 1], [], []>} : vector<16x16xf32>, vector<16x16xf32>, vector<16x16xf32> -> vector<16x16xf32>
    %c88 = arith.constant 88 : index
    %c0_39 = arith.constant 0 : index
    %113 = vector.load %arg2[%c88, %c0_39] : memref<296x32xf32, #tpu.memory_space<vmem>>, vector<16x32xf32>
    %cst_40 = arith.constant dense<0.000000e+00> : vector<16x32xf32>
    %114 = tpu.matmul %112, %113, %cst_40 {dimension_numbers = #tpu.dot_dimension_numbers<[1], [0], [0], [1], [0, 0, 1, 1], [], []>} : vector<16x16xf32>, vector<16x32xf32>, vector<16x32xf32> -> vector<16x32xf32>
    %115 = arith.addf %95, %114 : vector<16x32xf32>
    %c3 = arith.constant 3 : index
    %c0_41 = arith.constant 0 : index
    %116 = vector.load %arg6[%c3, %c0_41] : memref<20x128xf32, #tpu.memory_space<vmem>>, vector<1x32xf32>
    %117 = vector.broadcast %116 : vector<1x32xf32> to vector<16x32xf32>
    %118 = arith.addf %115, %117 : vector<16x32xf32>
    %119 = arith.addf %36, %118 : vector<16x32xf32>
    %cst_42 = arith.constant dense<0.000000e+00> : vector<16xf32>
    %120 = vector.multi_reduction <add>, %119, %cst_42 [1] : vector<16x32xf32> to vector<16xf32>
    %121 = vector.shape_cast %120 : vector<16xf32> to vector<16x1xf32>
    %cst_43 = arith.constant 3.200000e+01 : f32
    %122 = vector.broadcast %cst_43 : f32 to vector<16x1xf32>
    %123 = arith.divf %121, %122 : vector<16x1xf32>
    %124 = vector.broadcast %123 : vector<16x1xf32> to vector<16x32xf32>
    %125 = arith.subf %119, %124 : vector<16x32xf32>
    %126 = vector.broadcast %123 : vector<16x1xf32> to vector<16x32xf32>
    %127 = arith.subf %119, %126 : vector<16x32xf32>
    %128 = arith.mulf %125, %127 : vector<16x32xf32>
    %cst_44 = arith.constant dense<0.000000e+00> : vector<16xf32>
    %129 = vector.multi_reduction <add>, %128, %cst_44 [1] : vector<16x32xf32> to vector<16xf32>
    %130 = vector.shape_cast %129 : vector<16xf32> to vector<16x1xf32>
    %cst_45 = arith.constant 3.200000e+01 : f32
    %131 = vector.broadcast %cst_45 : f32 to vector<16x1xf32>
    %132 = arith.divf %130, %131 : vector<16x1xf32>
    %133 = vector.broadcast %123 : vector<16x1xf32> to vector<16x32xf32>
    %134 = arith.subf %119, %133 : vector<16x32xf32>
    %cst_46 = arith.constant 9.99999996E-13 : f32
    %135 = vector.broadcast %cst_46 : f32 to vector<16x1xf32>
    %136 = arith.addf %132, %135 : vector<16x1xf32>
    %137 = math.rsqrt %136 : vector<16x1xf32>
    %138 = vector.broadcast %137 : vector<16x1xf32> to vector<16x32xf32>
    %139 = arith.mulf %134, %138 : vector<16x32xf32>
    %c4 = arith.constant 4 : index
    %c0_47 = arith.constant 0 : index
    %140 = vector.load %arg6[%c4, %c0_47] : memref<20x128xf32, #tpu.memory_space<vmem>>, vector<1x32xf32>
    %141 = vector.broadcast %140 : vector<1x32xf32> to vector<16x32xf32>
    %142 = arith.mulf %139, %141 : vector<16x32xf32>
    %c5 = arith.constant 5 : index
    %c0_48 = arith.constant 0 : index
    %143 = vector.load %arg6[%c5, %c0_48] : memref<20x128xf32, #tpu.memory_space<vmem>>, vector<1x32xf32>
    %144 = vector.broadcast %143 : vector<1x32xf32> to vector<16x32xf32>
    %145 = arith.addf %142, %144 : vector<16x32xf32>
    %c0_49 = arith.constant 0 : index
    %c0_50 = arith.constant 0 : index
    %146 = vector.load %arg4[%c0_49, %c0_50] : memref<64x64xf32, #tpu.memory_space<vmem>>, vector<32x64xf32>
    %cst_51 = arith.constant dense<0.000000e+00> : vector<16x64xf32>
    %147 = tpu.matmul %145, %146, %cst_51 {dimension_numbers = #tpu.dot_dimension_numbers<[1], [0], [0], [1], [0, 0, 1, 1], [], []>} : vector<16x32xf32>, vector<32x64xf32>, vector<16x64xf32> -> vector<16x64xf32>
    %c6 = arith.constant 6 : index
    %c0_52 = arith.constant 0 : index
    %148 = vector.load %arg6[%c6, %c0_52] : memref<20x128xf32, #tpu.memory_space<vmem>>, vector<1x64xf32>
    %149 = vector.broadcast %148 : vector<1x64xf32> to vector<16x64xf32>
    %150 = arith.addf %147, %149 : vector<16x64xf32>
    %cst_53 = arith.constant 5.000000e-01 : f32
    %151 = vector.broadcast %cst_53 : f32 to vector<16x64xf32>
    %152 = arith.mulf %151, %150 : vector<16x64xf32>
    %cst_54 = arith.constant 4.471500e-02 : f32
    %153 = vector.broadcast %cst_54 : f32 to vector<16x64xf32>
    %154 = arith.mulf %153, %150 : vector<16x64xf32>
    %155 = arith.mulf %154, %150 : vector<16x64xf32>
    %156 = arith.mulf %155, %150 : vector<16x64xf32>
    %157 = arith.addf %150, %156 : vector<16x64xf32>
    %cst_55 = arith.constant 0.797884583 : f32
    %158 = vector.broadcast %cst_55 : f32 to vector<16x64xf32>
    %159 = arith.mulf %158, %157 : vector<16x64xf32>
    %160 = math.tanh %159 : vector<16x64xf32>
    %cst_56 = arith.constant 1.000000e+00 : f32
    %161 = vector.broadcast %cst_56 : f32 to vector<16x64xf32>
    %162 = arith.addf %161, %160 : vector<16x64xf32>
    %163 = arith.mulf %152, %162 : vector<16x64xf32>
    %c136 = arith.constant 136 : index
    %c0_57 = arith.constant 0 : index
    %164 = vector.load %arg2[%c136, %c0_57] : memref<296x32xf32, #tpu.memory_space<vmem>>, vector<64x32xf32>
    %cst_58 = arith.constant dense<0.000000e+00> : vector<16x32xf32>
    %165 = tpu.matmul %163, %164, %cst_58 {dimension_numbers = #tpu.dot_dimension_numbers<[1], [0], [0], [1], [0, 0, 1, 1], [], []>} : vector<16x64xf32>, vector<64x32xf32>, vector<16x32xf32> -> vector<16x32xf32>
    %c7 = arith.constant 7 : index
    %c0_59 = arith.constant 0 : index
    %166 = vector.load %arg6[%c7, %c0_59] : memref<20x128xf32, #tpu.memory_space<vmem>>, vector<1x32xf32>
    %167 = vector.broadcast %166 : vector<1x32xf32> to vector<16x32xf32>
    %168 = arith.addf %165, %167 : vector<16x32xf32>
    %169 = arith.addf %145, %168 : vector<16x32xf32>
    %cst_60 = arith.constant dense<0.000000e+00> : vector<16xf32>
    %170 = vector.multi_reduction <add>, %169, %cst_60 [1] : vector<16x32xf32> to vector<16xf32>
    %171 = vector.shape_cast %170 : vector<16xf32> to vector<16x1xf32>
    %cst_61 = arith.constant 3.200000e+01 : f32
    %172 = vector.broadcast %cst_61 : f32 to vector<16x1xf32>
    %173 = arith.divf %171, %172 : vector<16x1xf32>
    %174 = vector.broadcast %173 : vector<16x1xf32> to vector<16x32xf32>
    %175 = arith.subf %169, %174 : vector<16x32xf32>
    %176 = vector.broadcast %173 : vector<16x1xf32> to vector<16x32xf32>
    %177 = arith.subf %169, %176 : vector<16x32xf32>
    %178 = arith.mulf %175, %177 : vector<16x32xf32>
    %cst_62 = arith.constant dense<0.000000e+00> : vector<16xf32>
    %179 = vector.multi_reduction <add>, %178, %cst_62 [1] : vector<16x32xf32> to vector<16xf32>
    %180 = vector.shape_cast %179 : vector<16xf32> to vector<16x1xf32>
    %cst_63 = arith.constant 3.200000e+01 : f32
    %181 = vector.broadcast %cst_63 : f32 to vector<16x1xf32>
    %182 = arith.divf %180, %181 : vector<16x1xf32>
    %183 = vector.broadcast %173 : vector<16x1xf32> to vector<16x32xf32>
    %184 = arith.subf %169, %183 : vector<16x32xf32>
    %cst_64 = arith.constant 9.99999996E-13 : f32
    %185 = vector.broadcast %cst_64 : f32 to vector<16x1xf32>
    %186 = arith.addf %182, %185 : vector<16x1xf32>
    %187 = math.rsqrt %186 : vector<16x1xf32>
    %188 = vector.broadcast %187 : vector<16x1xf32> to vector<16x32xf32>
    %189 = arith.mulf %184, %188 : vector<16x32xf32>
    %c8 = arith.constant 8 : index
    %c0_65 = arith.constant 0 : index
    %190 = vector.load %arg6[%c8, %c0_65] : memref<20x128xf32, #tpu.memory_space<vmem>>, vector<1x32xf32>
    %191 = vector.broadcast %190 : vector<1x32xf32> to vector<16x32xf32>
    %192 = arith.mulf %189, %191 : vector<16x32xf32>
    %c9 = arith.constant 9 : index
    %c0_66 = arith.constant 0 : index
    %193 = vector.load %arg6[%c9, %c0_66] : memref<20x128xf32, #tpu.memory_space<vmem>>, vector<1x32xf32>
    %194 = vector.broadcast %193 : vector<1x32xf32> to vector<16x32xf32>
    %195 = arith.addf %192, %194 : vector<16x32xf32>
    %c32 = arith.constant 32 : index
    %c0_67 = arith.constant 0 : index
    %196 = vector.load %arg3[%c32, %c0_67] : memref<64x96xf32, #tpu.memory_space<vmem>>, vector<32x96xf32>
    %cst_68 = arith.constant dense<0.000000e+00> : vector<16x96xf32>
    %197 = tpu.matmul %195, %196, %cst_68 {dimension_numbers = #tpu.dot_dimension_numbers<[1], [0], [0], [1], [0, 0, 1, 1], [], []>} : vector<16x32xf32>, vector<32x96xf32>, vector<16x96xf32> -> vector<16x96xf32>
    %c10 = arith.constant 10 : index
    %c0_69 = arith.constant 0 : index
    %198 = vector.load %arg6[%c10, %c0_69] : memref<20x128xf32, #tpu.memory_space<vmem>>, vector<1x96xf32>
    %199 = vector.broadcast %198 : vector<1x96xf32> to vector<16x96xf32>
    %200 = arith.addf %197, %199 : vector<16x96xf32>
    %cst_70 = arith.constant 0.000000e+00 : f32
    %201 = vector.broadcast %cst_70 : f32 to vector<16x32xf32>
    %202 = vector.extract_strided_slice %200 {offsets = [0, 0], sizes = [16, 16], strides = [1, 1]} : vector<16x96xf32> to vector<16x16xf32>
    %203 = vector.extract_strided_slice %200 {offsets = [0, 32], sizes = [16, 16], strides = [1, 1]} : vector<16x96xf32> to vector<16x16xf32>
    %204 = vector.extract_strided_slice %200 {offsets = [0, 64], sizes = [16, 16], strides = [1, 1]} : vector<16x96xf32> to vector<16x16xf32>
    %cst_71 = arith.constant dense<0.000000e+00> : vector<16x16xf32>
    %205 = tpu.matmul %202, %203, %cst_71 {dimension_numbers = #tpu.dot_dimension_numbers<[1], [1], [0], [0], [0, 0, 1, 0], [], []>} : vector<16x16xf32>, vector<16x16xf32>, vector<16x16xf32> -> vector<16x16xf32>
    %cst_72 = arith.constant 2.500000e-01 : f32
    %206 = vector.broadcast %cst_72 : f32 to vector<16x16xf32>
    %207 = arith.mulf %205, %206 : vector<16x16xf32>
    %208 = arith.addf %207, %69 : vector<16x16xf32>
    %cst_73 = arith.constant dense<0xFF800000> : vector<16xf32>
    %209 = vector.multi_reduction <maximumf>, %208, %cst_73 [1] : vector<16x16xf32> to vector<16xf32>
    %210 = vector.shape_cast %209 : vector<16xf32> to vector<16x1xf32>
    %211 = vector.broadcast %210 : vector<16x1xf32> to vector<16x16xf32>
    %212 = arith.subf %208, %211 : vector<16x16xf32>
    %213 = math.exp %212 : vector<16x16xf32>
    %cst_74 = arith.constant dense<0.000000e+00> : vector<16xf32>
    %214 = vector.multi_reduction <add>, %213, %cst_74 [1] : vector<16x16xf32> to vector<16xf32>
    %215 = vector.shape_cast %214 : vector<16xf32> to vector<16x1xf32>
    %216 = vector.broadcast %215 : vector<16x1xf32> to vector<16x16xf32>
    %217 = arith.divf %213, %216 : vector<16x16xf32>
    %cst_75 = arith.constant dense<0.000000e+00> : vector<16x16xf32>
    %218 = tpu.matmul %217, %204, %cst_75 {dimension_numbers = #tpu.dot_dimension_numbers<[1], [0], [0], [1], [0, 0, 1, 1], [], []>} : vector<16x16xf32>, vector<16x16xf32>, vector<16x16xf32> -> vector<16x16xf32>
    %c104 = arith.constant 104 : index
    %c0_76 = arith.constant 0 : index
    %219 = vector.load %arg2[%c104, %c0_76] : memref<296x32xf32, #tpu.memory_space<vmem>>, vector<16x32xf32>
    %cst_77 = arith.constant dense<0.000000e+00> : vector<16x32xf32>
    %220 = tpu.matmul %218, %219, %cst_77 {dimension_numbers = #tpu.dot_dimension_numbers<[1], [0], [0], [1], [0, 0, 1, 1], [], []>} : vector<16x16xf32>, vector<16x32xf32>, vector<16x32xf32> -> vector<16x32xf32>
    %221 = arith.addf %201, %220 : vector<16x32xf32>
    %222 = vector.extract_strided_slice %200 {offsets = [0, 16], sizes = [16, 16], strides = [1, 1]} : vector<16x96xf32> to vector<16x16xf32>
    %223 = vector.extract_strided_slice %200 {offsets = [0, 48], sizes = [16, 16], strides = [1, 1]} : vector<16x96xf32> to vector<16x16xf32>
    %224 = vector.extract_strided_slice %200 {offsets = [0, 80], sizes = [16, 16], strides = [1, 1]} : vector<16x96xf32> to vector<16x16xf32>
    %cst_78 = arith.constant dense<0.000000e+00> : vector<16x16xf32>
    %225 = tpu.matmul %222, %223, %cst_78 {dimension_numbers = #tpu.dot_dimension_numbers<[1], [1], [0], [0], [0, 0, 1, 0], [], []>} : vector<16x16xf32>, vector<16x16xf32>, vector<16x16xf32> -> vector<16x16xf32>
    %cst_79 = arith.constant 2.500000e-01 : f32
    %226 = vector.broadcast %cst_79 : f32 to vector<16x16xf32>
    %227 = arith.mulf %225, %226 : vector<16x16xf32>
    %228 = arith.addf %227, %69 : vector<16x16xf32>
    %cst_80 = arith.constant dense<0xFF800000> : vector<16xf32>
    %229 = vector.multi_reduction <maximumf>, %228, %cst_80 [1] : vector<16x16xf32> to vector<16xf32>
    %230 = vector.shape_cast %229 : vector<16xf32> to vector<16x1xf32>
    %231 = vector.broadcast %230 : vector<16x1xf32> to vector<16x16xf32>
    %232 = arith.subf %228, %231 : vector<16x16xf32>
    %233 = math.exp %232 : vector<16x16xf32>
    %cst_81 = arith.constant dense<0.000000e+00> : vector<16xf32>
    %234 = vector.multi_reduction <add>, %233, %cst_81 [1] : vector<16x16xf32> to vector<16xf32>
    %235 = vector.shape_cast %234 : vector<16xf32> to vector<16x1xf32>
    %236 = vector.broadcast %235 : vector<16x1xf32> to vector<16x16xf32>
    %237 = arith.divf %233, %236 : vector<16x16xf32>
    %cst_82 = arith.constant dense<0.000000e+00> : vector<16x16xf32>
    %238 = tpu.matmul %237, %224, %cst_82 {dimension_numbers = #tpu.dot_dimension_numbers<[1], [0], [0], [1], [0, 0, 1, 1], [], []>} : vector<16x16xf32>, vector<16x16xf32>, vector<16x16xf32> -> vector<16x16xf32>
    %c120 = arith.constant 120 : index
    %c0_83 = arith.constant 0 : index
    %239 = vector.load %arg2[%c120, %c0_83] : memref<296x32xf32, #tpu.memory_space<vmem>>, vector<16x32xf32>
    %cst_84 = arith.constant dense<0.000000e+00> : vector<16x32xf32>
    %240 = tpu.matmul %238, %239, %cst_84 {dimension_numbers = #tpu.dot_dimension_numbers<[1], [0], [0], [1], [0, 0, 1, 1], [], []>} : vector<16x16xf32>, vector<16x32xf32>, vector<16x32xf32> -> vector<16x32xf32>
    %241 = arith.addf %221, %240 : vector<16x32xf32>
    %c11 = arith.constant 11 : index
    %c0_85 = arith.constant 0 : index
    %242 = vector.load %arg6[%c11, %c0_85] : memref<20x128xf32, #tpu.memory_space<vmem>>, vector<1x32xf32>
    %243 = vector.broadcast %242 : vector<1x32xf32> to vector<16x32xf32>
    %244 = arith.addf %241, %243 : vector<16x32xf32>
    %245 = arith.addf %195, %244 : vector<16x32xf32>
    %cst_86 = arith.constant dense<0.000000e+00> : vector<16xf32>
    %246 = vector.multi_reduction <add>, %245, %cst_86 [1] : vector<16x32xf32> to vector<16xf32>
    %247 = vector.shape_cast %246 : vector<16xf32> to vector<16x1xf32>
    %cst_87 = arith.constant 3.200000e+01 : f32
    %248 = vector.broadcast %cst_87 : f32 to vector<16x1xf32>
    %249 = arith.divf %247, %248 : vector<16x1xf32>
    %250 = vector.broadcast %249 : vector<16x1xf32> to vector<16x32xf32>
    %251 = arith.subf %245, %250 : vector<16x32xf32>
    %252 = vector.broadcast %249 : vector<16x1xf32> to vector<16x32xf32>
    %253 = arith.subf %245, %252 : vector<16x32xf32>
    %254 = arith.mulf %251, %253 : vector<16x32xf32>
    %cst_88 = arith.constant dense<0.000000e+00> : vector<16xf32>
    %255 = vector.multi_reduction <add>, %254, %cst_88 [1] : vector<16x32xf32> to vector<16xf32>
    %256 = vector.shape_cast %255 : vector<16xf32> to vector<16x1xf32>
    %cst_89 = arith.constant 3.200000e+01 : f32
    %257 = vector.broadcast %cst_89 : f32 to vector<16x1xf32>
    %258 = arith.divf %256, %257 : vector<16x1xf32>
    %259 = vector.broadcast %249 : vector<16x1xf32> to vector<16x32xf32>
    %260 = arith.subf %245, %259 : vector<16x32xf32>
    %cst_90 = arith.constant 9.99999996E-13 : f32
    %261 = vector.broadcast %cst_90 : f32 to vector<16x1xf32>
    %262 = arith.addf %258, %261 : vector<16x1xf32>
    %263 = math.rsqrt %262 : vector<16x1xf32>
    %264 = vector.broadcast %263 : vector<16x1xf32> to vector<16x32xf32>
    %265 = arith.mulf %260, %264 : vector<16x32xf32>
    %c12 = arith.constant 12 : index
    %c0_91 = arith.constant 0 : index
    %266 = vector.load %arg6[%c12, %c0_91] : memref<20x128xf32, #tpu.memory_space<vmem>>, vector<1x32xf32>
    %267 = vector.broadcast %266 : vector<1x32xf32> to vector<16x32xf32>
    %268 = arith.mulf %265, %267 : vector<16x32xf32>
    %c13 = arith.constant 13 : index
    %c0_92 = arith.constant 0 : index
    %269 = vector.load %arg6[%c13, %c0_92] : memref<20x128xf32, #tpu.memory_space<vmem>>, vector<1x32xf32>
    %270 = vector.broadcast %269 : vector<1x32xf32> to vector<16x32xf32>
    %271 = arith.addf %268, %270 : vector<16x32xf32>
    %c32_93 = arith.constant 32 : index
    %c0_94 = arith.constant 0 : index
    %272 = vector.load %arg4[%c32_93, %c0_94] : memref<64x64xf32, #tpu.memory_space<vmem>>, vector<32x64xf32>
    %cst_95 = arith.constant dense<0.000000e+00> : vector<16x64xf32>
    %273 = tpu.matmul %271, %272, %cst_95 {dimension_numbers = #tpu.dot_dimension_numbers<[1], [0], [0], [1], [0, 0, 1, 1], [], []>} : vector<16x32xf32>, vector<32x64xf32>, vector<16x64xf32> -> vector<16x64xf32>
    %c14 = arith.constant 14 : index
    %c0_96 = arith.constant 0 : index
    %274 = vector.load %arg6[%c14, %c0_96] : memref<20x128xf32, #tpu.memory_space<vmem>>, vector<1x64xf32>
    %275 = vector.broadcast %274 : vector<1x64xf32> to vector<16x64xf32>
    %276 = arith.addf %273, %275 : vector<16x64xf32>
    %cst_97 = arith.constant 5.000000e-01 : f32
    %277 = vector.broadcast %cst_97 : f32 to vector<16x64xf32>
    %278 = arith.mulf %277, %276 : vector<16x64xf32>
    %cst_98 = arith.constant 4.471500e-02 : f32
    %279 = vector.broadcast %cst_98 : f32 to vector<16x64xf32>
    %280 = arith.mulf %279, %276 : vector<16x64xf32>
    %281 = arith.mulf %280, %276 : vector<16x64xf32>
    %282 = arith.mulf %281, %276 : vector<16x64xf32>
    %283 = arith.addf %276, %282 : vector<16x64xf32>
    %cst_99 = arith.constant 0.797884583 : f32
    %284 = vector.broadcast %cst_99 : f32 to vector<16x64xf32>
    %285 = arith.mulf %284, %283 : vector<16x64xf32>
    %286 = math.tanh %285 : vector<16x64xf32>
    %cst_100 = arith.constant 1.000000e+00 : f32
    %287 = vector.broadcast %cst_100 : f32 to vector<16x64xf32>
    %288 = arith.addf %287, %286 : vector<16x64xf32>
    %289 = arith.mulf %278, %288 : vector<16x64xf32>
    %c200 = arith.constant 200 : index
    %c0_101 = arith.constant 0 : index
    %290 = vector.load %arg2[%c200, %c0_101] : memref<296x32xf32, #tpu.memory_space<vmem>>, vector<64x32xf32>
    %cst_102 = arith.constant dense<0.000000e+00> : vector<16x32xf32>
    %291 = tpu.matmul %289, %290, %cst_102 {dimension_numbers = #tpu.dot_dimension_numbers<[1], [0], [0], [1], [0, 0, 1, 1], [], []>} : vector<16x64xf32>, vector<64x32xf32>, vector<16x32xf32> -> vector<16x32xf32>
    %c15 = arith.constant 15 : index
    %c0_103 = arith.constant 0 : index
    %292 = vector.load %arg6[%c15, %c0_103] : memref<20x128xf32, #tpu.memory_space<vmem>>, vector<1x32xf32>
    %293 = vector.broadcast %292 : vector<1x32xf32> to vector<16x32xf32>
    %294 = arith.addf %291, %293 : vector<16x32xf32>
    %295 = arith.addf %271, %294 : vector<16x32xf32>
    %cst_104 = arith.constant dense<0.000000e+00> : vector<16xf32>
    %296 = vector.multi_reduction <add>, %295, %cst_104 [1] : vector<16x32xf32> to vector<16xf32>
    %297 = vector.shape_cast %296 : vector<16xf32> to vector<16x1xf32>
    %cst_105 = arith.constant 3.200000e+01 : f32
    %298 = vector.broadcast %cst_105 : f32 to vector<16x1xf32>
    %299 = arith.divf %297, %298 : vector<16x1xf32>
    %300 = vector.broadcast %299 : vector<16x1xf32> to vector<16x32xf32>
    %301 = arith.subf %295, %300 : vector<16x32xf32>
    %302 = vector.broadcast %299 : vector<16x1xf32> to vector<16x32xf32>
    %303 = arith.subf %295, %302 : vector<16x32xf32>
    %304 = arith.mulf %301, %303 : vector<16x32xf32>
    %cst_106 = arith.constant dense<0.000000e+00> : vector<16xf32>
    %305 = vector.multi_reduction <add>, %304, %cst_106 [1] : vector<16x32xf32> to vector<16xf32>
    %306 = vector.shape_cast %305 : vector<16xf32> to vector<16x1xf32>
    %cst_107 = arith.constant 3.200000e+01 : f32
    %307 = vector.broadcast %cst_107 : f32 to vector<16x1xf32>
    %308 = arith.divf %306, %307 : vector<16x1xf32>
    %309 = vector.broadcast %299 : vector<16x1xf32> to vector<16x32xf32>
    %310 = arith.subf %295, %309 : vector<16x32xf32>
    %cst_108 = arith.constant 9.99999996E-13 : f32
    %311 = vector.broadcast %cst_108 : f32 to vector<16x1xf32>
    %312 = arith.addf %308, %311 : vector<16x1xf32>
    %313 = math.rsqrt %312 : vector<16x1xf32>
    %314 = vector.broadcast %313 : vector<16x1xf32> to vector<16x32xf32>
    %315 = arith.mulf %310, %314 : vector<16x32xf32>
    %c16 = arith.constant 16 : index
    %c0_109 = arith.constant 0 : index
    %316 = vector.load %arg6[%c16, %c0_109] : memref<20x128xf32, #tpu.memory_space<vmem>>, vector<1x32xf32>
    %317 = vector.broadcast %316 : vector<1x32xf32> to vector<16x32xf32>
    %318 = arith.mulf %315, %317 : vector<16x32xf32>
    %c17 = arith.constant 17 : index
    %c0_110 = arith.constant 0 : index
    %319 = vector.load %arg6[%c17, %c0_110] : memref<20x128xf32, #tpu.memory_space<vmem>>, vector<1x32xf32>
    %320 = vector.broadcast %319 : vector<1x32xf32> to vector<16x32xf32>
    %321 = arith.addf %318, %320 : vector<16x32xf32>
    %322 = tpu.iota {dimensions = array<i32: 1>} : vector<8x16xi32>
    %323 = tpu.iota {dimensions = array<i32: 0>} : vector<8x16xi32>
    %c8_i32_111 = arith.constant 8 : i32
    %324 = vector.broadcast %c8_i32_111 : i32 to vector<8x16xi32>
    %325 = arith.muli %324, %323 : vector<8x16xi32>
    %326 = arith.cmpi eq, %322, %325 : vector<8x16xi32>
    %327 = arith.extui %326 : vector<8x16xi1> to vector<8x16xi32>
    %328 = arith.sitofp %327 : vector<8x16xi32> to vector<8x16xf32>
    %cst_112 = arith.constant dense<0.000000e+00> : vector<8x32xf32>
    %329 = tpu.matmul %328, %321, %cst_112 {dimension_numbers = #tpu.dot_dimension_numbers<[1], [0], [0], [1], [0, 0, 1, 1], [], []>} : vector<8x16xf32>, vector<16x32xf32>, vector<8x32xf32> -> vector<8x32xf32>
    %c264 = arith.constant 264 : index
    %c0_113 = arith.constant 0 : index
    %330 = vector.load %arg2[%c264, %c0_113] : memref<296x32xf32, #tpu.memory_space<vmem>>, vector<32x32xf32>
    %cst_114 = arith.constant dense<0.000000e+00> : vector<8x32xf32>
    %331 = tpu.matmul %329, %330, %cst_114 {dimension_numbers = #tpu.dot_dimension_numbers<[1], [0], [0], [1], [0, 0, 1, 1], [], []>} : vector<8x32xf32>, vector<32x32xf32>, vector<8x32xf32> -> vector<8x32xf32>
    %c18 = arith.constant 18 : index
    %c0_115 = arith.constant 0 : index
    %332 = vector.load %arg6[%c18, %c0_115] : memref<20x128xf32, #tpu.memory_space<vmem>>, vector<1x32xf32>
    %333 = vector.broadcast %332 : vector<1x32xf32> to vector<8x32xf32>
    %334 = arith.addf %331, %333 : vector<8x32xf32>
    %335 = math.tanh %334 : vector<8x32xf32>
    %c0_116 = arith.constant 0 : index
    %c0_117 = arith.constant 0 : index
    %336 = vector.load %arg5[%c0_116, %c0_117] : memref<32x128xf32, #tpu.memory_space<vmem>>, vector<32x128xf32>
    %cst_118 = arith.constant dense<0.000000e+00> : vector<8x128xf32>
    %337 = tpu.matmul %335, %336, %cst_118 {dimension_numbers = #tpu.dot_dimension_numbers<[1], [0], [0], [1], [0, 0, 1, 1], [], []>} : vector<8x32xf32>, vector<32x128xf32>, vector<8x128xf32> -> vector<8x128xf32>
    %c19 = arith.constant 19 : index
    %c0_119 = arith.constant 0 : index
    %338 = vector.load %arg6[%c19, %c0_119] : memref<20x128xf32, #tpu.memory_space<vmem>>, vector<1x128xf32>
    %339 = vector.broadcast %338 : vector<1x128xf32> to vector<8x128xf32>
    %340 = arith.addf %337, %339 : vector<8x128xf32>
    %cst_120 = arith.constant 5.000000e-01 : f32
    %341 = vector.broadcast %cst_120 : f32 to vector<8x128xf32>
    %342 = arith.mulf %341, %340 : vector<8x128xf32>
    %343 = math.tanh %342 : vector<8x128xf32>
    %cst_121 = arith.constant 1.000000e+00 : f32
    %344 = vector.broadcast %cst_121 : f32 to vector<8x128xf32>
    %345 = arith.addf %344, %343 : vector<8x128xf32>
    %cst_122 = arith.constant 5.000000e-01 : f32
    %346 = vector.broadcast %cst_122 : f32 to vector<8x128xf32>
    %347 = arith.mulf %346, %345 : vector<8x128xf32>
    %c0_123 = arith.constant 0 : index
    %c0_124 = arith.constant 0 : index
    %348 = vector.load %arg7[%c0_123, %c0_124] : memref<8x128xf32, #tpu.memory_space<vmem>>, vector<8x128xf32>
    tpu.vector_store %arg7[%c0_123, %c0_124], %347 {strides = array<i32>} : memref<8x128xf32, #tpu.memory_space<vmem>>, vector<8x128xf32>,
    return
  }
}

</mosaic_0001>

<llo_original>
// kernel: forward.1
$region0: #{forward.1}
  #allocation0 [shape = 'u32[]', space=smem, size = 0x4, offset = 0x4, fixed_abs, tag = 'smem constant byte address 0x4 - core index']
  #allocation1 [shape = 'u32[144,128]{1,0:T(1,128)}', space=vmem, size = 0x12000, scoped, tag = 'internal scratch']
  %s0 = inlined_call_operand.vmem [shape: s32[16,1], index: 0, kind: input, shape index: {}]
  %s1 = inlined_call_operand.vmem [shape: f32[1,16], index: 1, kind: input, shape index: {}]
  %s2 = inlined_call_operand.vmem [shape: f32[296,32], index: 2, kind: input, shape index: {}]
  %s3 = inlined_call_operand.vmem [shape: f32[64,96], index: 3, kind: input, shape index: {}]
  %s4 = inlined_call_operand.vmem [shape: f32[64,64], index: 4, kind: input, shape index: {}]
  %s5 = inlined_call_operand.vmem [shape: f32[32,128], index: 5, kind: input, shape index: {}]
  %s6 = inlined_call_operand.vmem [shape: f32[20,128], index: 6, kind: input, shape index: {}]
  %s7 = inlined_call_operand.vmem [shape: f32[8,128], index: 7, kind: output, shape index: {}]
  %s8 = sld [smem:[#allocation0]]
  $region38: #{forward.1} parent=0
    _
  %s10 = ssub.s32 1, %s8
  %s11 = scalar_select 0, %s10, %s8
  // Predicated region
  $region2: #{forward.1} parent=0 // pred_check
    _
  $region3: #{forward.1} parent=0 // pred_check_branch
    %13 = sbr.rel (0) target = $region5
  $region4: #{forward.1} parent=0 // pred_region
    _
  $region5: #{forward.1} parent=0 // pred_fallthru
    _
  // Predicated region
  $region6: #{forward.1} parent=0 // pred_check
    _
  $region7: #{forward.1} parent=0 // pred_check_branch
    %15 = sbr.rel (0) target = $region9
  $region8: #{forward.1} parent=0 // pred_region
    _
  $region9: #{forward.1} parent=0 // pred_fallthru
    _
  // Predicated region
  $region10: #{forward.1} parent=0 // pred_check
    _
  $region11: #{forward.1} parent=0 // pred_check_branch
    %17 = sbr.rel (0) target = $region13
  $region12: #{forward.1} parent=0 // pred_region
    _
  $region13: #{forward.1} parent=0 // pred_fallthru
    _
  // Predicated region
  $region14: #{forward.1} parent=0 // pred_check
    _
  $region15: #{forward.1} parent=0 // pred_check_branch
    %19 = sbr.rel (0) target = $region17
  $region16: #{forward.1} parent=0 // pred_region
    _
  $region17: #{forward.1} parent=0 // pred_fallthru
    _
  // Predicated region
  $region18: #{forward.1} parent=0 // pred_check
    _
  $region19: #{forward.1} parent=0 // pred_check_branch
    %21 = sbr.rel (0) target = $region21
  $region20: #{forward.1} parent=0 // pred_region
    _
  $region21: #{forward.1} parent=0 // pred_fallthru
    _
  // Predicated region
  $region22: #{forward.1} parent=0 // pred_check
    _
  $region23: #{forward.1} parent=0 // pred_check_branch
    %23 = sbr.rel (0) target = $region25
  $region24: #{forward.1} parent=0 // pred_region
    _
  $region25: #{forward.1} parent=0 // pred_fallthru
    _
  // Predicated region
  $region26: #{forward.1} parent=0 // pred_check
    _
  $region27: #{forward.1} parent=0 // pred_check_branch
    %25 = sbr.rel (0) target = $region29
  $region28: #{forward.1} parent=0 // pred_region
    _
  $region29: #{forward.1} parent=0 // pred_fallthru
    _
  %v26 = vld [vmem:[%s0] sm:$0xff]
  %v27 = vld [vmem:[%s0 + $0x8] sm:$0xff]
  %v28 = vlaneseq
  %v29 = vand.u32 %v28, 127
  %30 = vset.pattern.permute.xlu0 0
  %31 = vperm.xlu0 %30, %v26
  %v32 = vpop.permute.xlu0 %31
  %33 = vset.pattern.permute.xlu0 0
  %34 = vperm.xlu0 %33, %v27
  %v35 = vpop.permute.xlu0 %34
  %vm36 = vcmp.eq.s32.totalorder %v29, %v32
  %vm37 = vcmp.eq.s32.totalorder %v29, %v35
  %v38 = vsel %vm36, 1, 0
  %v39 = vsel %vm37, 1, 0
  %v40 = vcvt.s32.f32 %v38
  %v41 = vcvt.s32.f32 %v39
  %v42 = vld [vmem:[%s2] sm:$0xff]
  %v43 = vld [vmem:[%s2 + $0x8] sm:$0xff]
  %v44 = vld [vmem:[%s2 + $0x10] sm:$0xff]
  %v45 = vld [vmem:[%s2 + $0x18] sm:$0xff]
  %v46 = vld [vmem:[%s2 + $0x20] sm:$0xff]
  %v47 = vld [vmem:[%s2 + $0x28] sm:$0xff]
  %v48 = vld [vmem:[%s2 + $0x30] sm:$0xff]
  %v49 = vld [vmem:[%s2 + $0x38] sm:$0xff]
  %v50 = vld [vmem:[%s2 + $0x40] sm:$0xff]
  %vm51 = vcmask 523264
  %v53 = vsel %vm51, %v40, 0
  %v56 = vsel %vm51, %v41, 0
  %58 = vmatprep.subr.mxu0 0.0
  %59 = vmatpush1.msra.mxu0 %v42
  %60 = vmatprep.subr.mxu0 0.0
  %61 = vmatpush1.msra.mxu0 %v43
  %62 = vmatprep.subr.mxu0 0.0
  %63 = vmatpush1.msra.mxu0 %v44
  %64 = vmatprep.subr.mxu0 0.0
  %65 = vmatpush1.msra.mxu0 %v45
  %66 = vmatprep.subr.mxu0 0.0
  %67 = vmatpush1.msra.mxu0 %v46
  %68 = vmatprep.subr.mxu0 0.0
  %69 = vmatpush1.msra.mxu0 %v47
  %70 = vmatprep.subr.mxu0 0.0
  %71 = vmatpush1.msra.mxu0 %v48
  %72 = vmatprep.subr.mxu0 0.0
  %73 = vmatpush1.msra.mxu0 %v49
  %74 = vmatprep.subr.mxu0 0.0
  %75 = vmatpush1.msra.mxu0 0.0
  %76 = vmatprep.subr.mxu0 0.0
  %77 = vmatpush1.msra.mxu0 0.0
  %78 = vmatprep.subr.mxu0 0.0
  %79 = vmatpush1.msra.mxu0 0.0
  %80 = vmatprep.subr.mxu0 0.0
  %81 = vmatpush1.msra.mxu0 0.0
  %82 = vmatprep.subr.mxu0 0.0
  %83 = vmatpush1.msra.mxu0 0.0
  %84 = vmatprep.subr.mxu0 0.0
  %85 = vmatpush1.msra.mxu0 0.0
  %86 = vmatprep.subr.mxu0 0.0
  %87 = vmatpush1.msra.mxu0 0.0
  %88 = vmatprep.subr.mxu0 0.0
  %89 = vmatpush1.msra.mxu0 0.0
  %90 = vmatprep.subr.mxu0 0.0
  %91 = vmatpush1.msra.mxu0 0.0
  %92 = vmatprep.subr.mxu0 0.0
  %93 = vmatpush1.msra.mxu0 0.0
  %94 = vmatprep.subr.mxu0 0.0
  %95 = vmatpush1.msra.mxu0 0.0
  %96 = vmatprep.subr.mxu0 0.0
  %97 = vmatpush1.msra.mxu0 0.0
  %98 = vmatprep.subr.mxu0 0.0
  %99 = vmatpush1.msra.mxu0 0.0
  %100 = vmatprep.subr.mxu0 0.0
  %101 = vmatpush1.msra.mxu0 0.0
  %102 = vmatprep.subr.mxu0 0.0
  %103 = vmatpush1.msra.mxu0 0.0
  %104 = vmatprep.subr.mxu0 0.0
  %105 = vmatpush1.msra.mxu0 0.0
  %106 = vmatprep.subr.mxu0 0.0
  %107 = vmatpush1.msra.mxu0 0.0
  %108 = vmatprep.subr.mxu0 0.0
  %109 = vmatpush1.msra.mxu0 0.0
  %110 = vmatprep.subr.mxu0 0.0
  %111 = vmatpush1.msra.mxu0 0.0
  %112 = vmatprep.subr.mxu0 0.0
  %113 = vmatpush1.msra.mxu0 0.0
  %114 = vmatprep.subr.mxu0 0.0
  %115 = vmatpush1.msra.mxu0 0.0
  %116 = vmatprep.subr.mxu0 0.0
  %117 = vmatpush1.msra.mxu0 0.0
  %118 = vmatprep.subr.mxu0 0.0
  %119 = vmatpush1.msra.mxu0 0.0
  %120 = vmatprep.subr.mxu0 0.0
  %121 = vmatpush1.msra.mxu0 0.0
  %122 = vmatprep.mubr.f32.mxu0 0.0
  %123 = vmatmul.mubr.f32.gmra.mrb[0].mxu0 %v53
  %v124 = vpop.f32.mrb[0].mxu0
  %v125 = vadd.f32 %v50, %v124
  %v126 = vpop.f32.mrb[0].mxu0
  %127 = vmatprep.mubr.f32.mxu0 0.0
  %128 = vmatmul.mubr.f32.gmra.mrb[0].mxu0 %v56
  %v129 = vpop.f32.mrb[0].mxu0
  %v130 = vadd.f32 %v50, %v129
  %v131 = vpop.f32.mrb[0].mxu0
  %132 = vdwg.mxu0
  %vm133 = vcmask 261120
  %v134 = vsel %vm133, %v125, 0.0
  %135 = vadd.xlane.f32.xlu0 %v134
  %v136 = vpop.xlane.xlu0 %135
  %v137 = vsel %vm133, %v130, 0.0
  %138 = vadd.xlane.f32.xlu0 %v137
  %v139 = vpop.xlane.xlu0 %138
  %v140 = vrcp.pop 32.0
  %v141 = vmul.f32 %v136, %v140
  %v142 = vmul.f32 %v139, %v140
  %v143 = vsub.f32 %v125, %v141
  %v144 = vsub.f32 %v130, %v142
  %v145 = vmul.f32 %v143, %v143
  %v146 = vmul.f32 %v144, %v144
  %v147 = vsel %vm133, %v145, 0.0
  %148 = vadd.xlane.f32.xlu0 %v147
  %v149 = vpop.xlane.xlu0 %148
  %v150 = vsel %vm133, %v146, 0.0
  %151 = vadd.xlane.f32.xlu0 %v150
  %v152 = vpop.xlane.xlu0 %151
  %v153 = vmul.f32 %v149, %v140
  %v154 = vmul.f32 %v152, %v140
  %v155 = vadd.f32 %v153, 1e-12
  %v156 = vadd.f32 %v154, 1e-12
  %v157 = vrsqrt.pop %v155
  %v158 = vrsqrt.pop %v156
  %v159 = vmul.f32 %v143, %v157
  %v160 = vmul.f32 %v144, %v158
  %v161 = vld [vmem:[%s6] sm:$0x1]
  %v162 = vlaneseq
  %v163 = vshrl.u32 %v162, 7
  %v164 = vsub.s32 0, %v163
  %v165 = vrot.slane %v161, %v164
  %v166 = vmul.f32 %v159, %v165
  %v167 = vmul.f32 %v160, %v165
  %v168 = vld [vmem:[%s6 + $0x1] sm:$0x1]
  %v169 = vlaneseq
  %v170 = vshrl.u32 %v169, 7
  %v171 = vsub.s32 0, %v170
  %v172 = vrot.slane %v168, %v171
  %v173 = vadd.f32 %v166, %v172
  %v174 = vadd.f32 %v167, %v172
  %v175 = vlaneseq
  %v176 = vshrl.u32 %v175, 7
  %v177 = vadd.s32 %v176, 8
  %vm178 = vcmp.ge.s32.totalorder %v176, 0
  %vm179 = vcmp.ge.s32.totalorder %v177, 0
  %vm180 = vcmp.lt.s32.totalorder %v176, 8
  %vm181 = vcmp.lt.s32.totalorder %v177, 8
  %vm182 = vmand %vm178, %vm180
  %vm183 = vmand %vm179, %vm181
  %vm184 = vcmp.ge.s32.totalorder %v29, 0
  %vm185 = vmand %vm182, %vm184
  %vm186 = vmand %vm183, %vm184
  %vm187 = vcmp.lt.s32.totalorder %v29, 8
  %vm188 = vmand %vm185, %vm187
  %vm189 = vmand %vm186, %vm187
  %vm190 = vcmp.ge.s32.totalorder %v176, 8
  %vm191 = vcmp.ge.s32.totalorder %v177, 8
  %vm192 = vcmp.lt.s32.totalorder %v176, 16
  %vm193 = vcmp.lt.s32.totalorder %v177, 16
  %vm194 = vmand %vm190, %vm192
  %vm195 = vmand %vm191, %vm193
  %vm196 = vcmp.ge.s32.totalorder %v29, 8
  %vm197 = vmand %vm194, %vm196
  %vm198 = vmand %vm195, %vm196
  %vm199 = vcmp.lt.s32.totalorder %v29, 16
  %vm200 = vmand %vm197, %vm199
  %vm201 = vmand %vm198, %vm199
  %vm202 = vmor %vm188, %vm200
  %vm203 = vmor %vm189, %vm201
  %v204 = vld [vmem:[%s1] sm:$0x1]
  %vm205 = vcmp.gt.f32.partialorder %v204, 0.5
  %v206 = vsel %vm205, 1, 0
  %v207 = vlaneseq
  %v208 = vshrl.u32 %v207, 7
  %v209 = vsub.s32 0, %v208
  %v210 = vrot.slane %v206, %v209
  %vm211 = vcmp.eq.s32.totalorder %v210, 1
  %vm212 = vmand %vm202, %vm211
  %vm213 = vmand %vm203, %vm211
  %v214 = vsel %vm212, 0.0, -10000.0
  %v215 = vsel %vm213, 0.0, -10000.0
  %v216 = vld [vmem:[%s3] sm:$0xff]
  %v217 = vld [vmem:[%s3 + $0x8] sm:$0xff]
  %v218 = vld [vmem:[%s3 + $0x10] sm:$0xff]
  %v219 = vld [vmem:[%s3 + $0x18] sm:$0xff]
  %v220 = vld [vmem:[%s6 + $0x2] sm:$0x1]
  %v221 = vlaneseq
  %v222 = vshrl.u32 %v221, 7
  %v223 = vsub.s32 0, %v222
  %v224 = vrot.slane %v220, %v223
  %v226 = vsel %vm133, %v173, 0
  %v229 = vsel %vm133, %v174, 0
  %231 = vmatprep.subr.mxu0 0.0
  %232 = vmatpush1.msra.mxu0 %v216
  %233 = vmatprep.subr.mxu0 0.0
  %234 = vmatpush1.msra.mxu0 %v217
  %235 = vmatprep.subr.mxu0 0.0
  %236 = vmatpush1.msra.mxu0 %v218
  %237 = vmatprep.subr.mxu0 0.0
  %238 = vmatpush1.msra.mxu0 %v219
  %239 = vmatprep.subr.mxu0 0.0
  %240 = vmatpush1.msra.mxu0 0.0
  %241 = vmatprep.subr.mxu0 0.0
  %242 = vmatpush1.msra.mxu0 0.0
  %243 = vmatprep.subr.mxu0 0.0
  %244 = vmatpush1.msra.mxu0 0.0
  %245 = vmatprep.subr.mxu0 0.0
  %246 = vmatpush1.msra.mxu0 0.0
  %247 = vmatprep.subr.mxu0 0.0
  %248 = vmatpush1.msra.mxu0 0.0
  %249 = vmatprep.subr.mxu0 0.0
  %250 = vmatpush1.msra.mxu0 0.0
  %251 = vmatprep.subr.mxu0 0.0
  %252 = vmatpush1.msra.mxu0 0.0
  %253 = vmatprep.subr.mxu0 0.0
  %254 = vmatpush1.msra.mxu0 0.0
  %255 = vmatprep.subr.mxu0 0.0
  %256 = vmatpush1.msra.mxu0 0.0
  %257 = vmatprep.subr.mxu0 0.0
  %258 = vmatpush1.msra.mxu0 0.0
  %259 = vmatprep.subr.mxu0 0.0
  %260 = vmatpush1.msra.mxu0 0.0
  %261 = vmatprep.subr.mxu0 0.0
  %262 = vmatpush1.msra.mxu0 0.0
  %263 = vmatprep.subr.mxu0 0.0
  %264 = vmatpush1.msra.mxu0 0.0
  %265 = vmatprep.subr.mxu0 0.0
  %266 = vmatpush1.msra.mxu0 0.0
  %267 = vmatprep.subr.mxu0 0.0
  %268 = vmatpush1.msra.mxu0 0.0
  %269 = vmatprep.subr.mxu0 0.0
  %270 = vmatpush1.msra.mxu0 0.0
  %271 = vmatprep.subr.mxu0 0.0
  %272 = vmatpush1.msra.mxu0 0.0
  %273 = vmatprep.subr.mxu0 0.0
  %274 = vmatpush1.msra.mxu0 0.0
  %275 = vmatprep.subr.mxu0 0.0
  %276 = vmatpush1.msra.mxu0 0.0
  %277 = vmatprep.subr.mxu0 0.0
  %278 = vmatpush1.msra.mxu0 0.0
  %279 = vmatprep.subr.mxu0 0.0
  %280 = vmatpush1.msra.mxu0 0.0
  %281 = vmatprep.subr.mxu0 0.0
  %282 = vmatpush1.msra.mxu0 0.0
  %283 = vmatprep.subr.mxu0 0.0
  %284 = vmatpush1.msra.mxu0 0.0
  %285 = vmatprep.subr.mxu0 0.0
  %286 = vmatpush1.msra.mxu0 0.0
  %287 = vmatprep.subr.mxu0 0.0
  %288 = vmatpush1.msra.mxu0 0.0
  %289 = vmatprep.subr.mxu0 0.0
  %290 = vmatpush1.msra.mxu0 0.0
  %291 = vmatprep.subr.mxu0 0.0
  %292 = vmatpush1.msra.mxu0 0.0
  %293 = vmatprep.subr.mxu0 0.0
  %294 = vmatpush1.msra.mxu0 0.0
  %295 = vmatprep.mubr.f32.mxu0 0.0
  %296 = vmatmul.mubr.f32.gmra.mrb[0].mxu0 %v226
  %v297 = vpop.f32.mrb[0].mxu0
  %v298 = vadd.f32 %v224, %v297
  %v299 = vpop.f32.mrb[0].mxu0
  %300 = vmatprep.mubr.f32.mxu0 0.0
  %301 = vmatmul.mubr.f32.gmra.mrb[0].mxu0 %v229
  %v302 = vpop.f32.mrb[0].mxu0
  %v303 = vadd.f32 %v224, %v302
  %v304 = vpop.f32.mrb[0].mxu0
  %305 = vdwg.mxu0
  %308 = vrot.lane.b32.xlu0 %v298, 96
  %v309 = vpop.permute.xlu0 %308
  %310 = vrot.lane.b32.xlu0 %v303, 96
  %v311 = vpop.permute.xlu0 %310
  %vm312 = vcmask 130048
  %v313 = vsel %vm312, %v298, 0
  %v315 = vsel %vm312, %v303, 0
  %v317 = vsel %vm312, %v309, 0
  %v319 = vsel %vm312, %v311, 0
  %321 = vmatprep.subr.mxu0 0.0
  %322 = vmatpush1.xpose.msra.mxu0 %v317
  %323 = vmatprep.subr.mxu0 0.0
  %324 = vmatpush1.xpose.msra.mxu0 %v319
  %325 = vmatprep.subr.mxu0 0.0
  %326 = vmatpush1.xpose.msra.mxu0 0.0
  %327 = vmatprep.subr.mxu0 0.0
  %328 = vmatpush1.xpose.msra.mxu0 0.0
  %329 = vmatprep.subr.mxu0 0.0
  %330 = vmatpush1.xpose.msra.mxu0 0.0
  %331 = vmatprep.subr.mxu0 0.0
  %332 = vmatpush1.xpose.msra.mxu0 0.0
  %333 = vmatprep.subr.mxu0 0.0
  %334 = vmatpush1.xpose.msra.mxu0 0.0
  %335 = vmatprep.subr.mxu0 0.0
  %336 = vmatpush1.xpose.msra.mxu0 0.0
  %337 = vmatprep.subr.mxu0 0.0
  %338 = vmatpush1.xpose.msra.mxu0 0.0
  %339 = vmatprep.subr.mxu0 0.0
  %340 = vmatpush1.xpose.msra.mxu0 0.0
  %341 = vmatprep.subr.mxu0 0.0
  %342 = vmatpush1.xpose.msra.mxu0 0.0
  %343 = vmatprep.subr.mxu0 0.0
  %344 = vmatpush1.xpose.msra.mxu0 0.0
  %345 = vmatprep.subr.mxu0 0.0
  %346 = vmatpush1.xpose.msra.mxu0 0.0
  %347 = vmatprep.subr.mxu0 0.0
  %348 = vmatpush1.xpose.msra.mxu0 0.0
  %349 = vmatprep.subr.mxu0 0.0
  %350 = vmatpush1.xpose.msra.mxu0 0.0
  %351 = vmatprep.subr.mxu0 0.0
  %352 = vmatpush1.xpose.msra.mxu0 0.0
  %353 = vmatprep.subr.mxu0 0.0
  %354 = vmatpush1.xpose.msra.mxu0 0.0
  %355 = vmatprep.subr.mxu0 0.0
  %356 = vmatpush1.xpose.msra.mxu0 0.0
  %357 = vmatprep.subr.mxu0 0.0
  %358 = vmatpush1.xpose.msra.mxu0 0.0
  %359 = vmatprep.subr.mxu0 0.0
  %360 = vmatpush1.xpose.msra.mxu0 0.0
  %361 = vmatprep.subr.mxu0 0.0
  %362 = vmatpush1.xpose.msra.mxu0 0.0
  %363 = vmatprep.subr.mxu0 0.0
  %364 = vmatpush1.xpose.msra.mxu0 0.0
  %365 = vmatprep.subr.mxu0 0.0
  %366 = vmatpush1.xpose.msra.mxu0 0.0
  %367 = vmatprep.subr.mxu0 0.0
  %368 = vmatpush1.xpose.msra.mxu0 0.0
  %369 = vmatprep.subr.mxu0 0.0
  %370 = vmatpush1.xpose.msra.mxu0 0.0
  %371 = vmatprep.subr.mxu0 0.0
  %372 = vmatpush1.xpose.msra.mxu0 0.0
  %373 = vmatprep.subr.mxu0 0.0
  %374 = vmatpush1.xpose.msra.mxu0 0.0
  %375 = vmatprep.subr.mxu0 0.0
  %376 = vmatpush1.xpose.msra.mxu0 0.0
  %377 = vmatprep.subr.mxu0 0.0
  %378 = vmatpush1.xpose.msra.mxu0 0.0
  %379 = vmatprep.subr.mxu0 0.0
  %380 = vmatpush1.xpose.msra.mxu0 0.0
  %381 = vmatprep.subr.mxu0 0.0
  %382 = vmatpush1.xpose.msra.mxu0 0.0
  %383 = vmatprep.subr.mxu0 0.0
  %384 = vmatpush1.xpose.msra.mxu0 0.0
  %385 = vmatprep.mubr.f32.mxu0 0.0
  %386 = vmatmul.mubr.f32.gmra.mrb[0].mxu0 %v313
  %v387 = vpop.f32.mrb[0].mxu0
  %v388 = vadd.f32 0.0, %v387
  %v389 = vpop.f32.mrb[0].mxu0
  %390 = vmatprep.mubr.f32.mxu0 0.0
  %391 = vmatmul.mubr.f32.gmra.mrb[0].mxu0 %v315
  %v392 = vpop.f32.mrb[0].mxu0
  %v393 = vadd.f32 0.0, %v392
  %v394 = vpop.f32.mrb[0].mxu0
  %395 = vdwg.mxu0
  %v396 = vmul.f32 %v388, 0.25
  %v397 = vmul.f32 %v393, 0.25
  %v398 = vadd.f32 %v396, %v214
  %v399 = vadd.f32 %v397, %v215
  %v400 = vsel %vm312, %v398, -inf
  %401 = vmax.xlane.f32.xlu0 %v400
  %v402 = vpop.xlane.xlu0 %401
  %v403 = vsel %vm312, %v399, -inf
  %404 = vmax.xlane.f32.xlu0 %v403
  %v405 = vpop.xlane.xlu0 %404
  %v406 = vsub.f32 %v398, %v402
  %v407 = vsub.f32 %v399, %v405
  %v408 = vmul.f32 %v406, 1.442695
  %v409 = vpow.pop %v408
  %v410 = vmul.f32 %v407, 1.442695
  %v411 = vpow.pop %v410
  %v412 = vsel %vm312, %v409, 0.0
  %413 = vadd.xlane.f32.xlu0 %v412
  %v414 = vpop.xlane.xlu0 %413
  %v415 = vsel %vm312, %v411, 0.0
  %416 = vadd.xlane.f32.xlu0 %v415
  %v417 = vpop.xlane.xlu0 %416
  %v418 = vrcp.pop %v414
  %v419 = vmul.f32 %v409, %v418
  %v420 = vrcp.pop %v417
  %v421 = vmul.f32 %v411, %v420
  %422 = vrot.lane.b32.xlu0 %v298, 64
  %v423 = vpop.permute.xlu0 %422
  %424 = vrot.lane.b32.xlu0 %v303, 64
  %v425 = vpop.permute.xlu0 %424
  %v429 = vsel %vm312, %v419, 0
  %v432 = vsel %vm312, %v421, 0
  %434 = vmatprep.subr.mxu0 0.0
  %435 = vmatpush1.msra.mxu0 %v423
  %436 = vmatprep.subr.mxu0 0.0
  %437 = vmatpush1.msra.mxu0 %v425
  %438 = vmatprep.subr.mxu0 0.0
  %439 = vmatpush1.msra.mxu0 0.0
  %440 = vmatprep.subr.mxu0 0.0
  %441 = vmatpush1.msra.mxu0 0.0
  %442 = vmatprep.subr.mxu0 0.0
  %443 = vmatpush1.msra.mxu0 0.0
  %444 = vmatprep.subr.mxu0 0.0
  %445 = vmatpush1.msra.mxu0 0.0
  %446 = vmatprep.subr.mxu0 0.0
  %447 = vmatpush1.msra.mxu0 0.0
  %448 = vmatprep.subr.mxu0 0.0
  %449 = vmatpush1.msra.mxu0 0.0
  %450 = vmatprep.subr.mxu0 0.0
  %451 = vmatpush1.msra.mxu0 0.0
  %452 = vmatprep.subr.mxu0 0.0
  %453 = vmatpush1.msra.mxu0 0.0
  %454 = vmatprep.subr.mxu0 0.0
  %455 = vmatpush1.msra.mxu0 0.0
  %456 = vmatprep.subr.mxu0 0.0
  %457 = vmatpush1.msra.mxu0 0.0
  %458 = vmatprep.subr.mxu0 0.0
  %459 = vmatpush1.msra.mxu0 0.0
  %460 = vmatprep.subr.mxu0 0.0
  %461 = vmatpush1.msra.mxu0 0.0
  %462 = vmatprep.subr.mxu0 0.0
  %463 = vmatpush1.msra.mxu0 0.0
  %464 = vmatprep.subr.mxu0 0.0
  %465 = vmatpush1.msra.mxu0 0.0
  %466 = vmatprep.subr.mxu0 0.0
  %467 = vmatpush1.msra.mxu0 0.0
  %468 = vmatprep.subr.mxu0 0.0
  %469 = vmatpush1.msra.mxu0 0.0
  %470 = vmatprep.subr.mxu0 0.0
  %471 = vmatpush1.msra.mxu0 0.0
  %472 = vmatprep.subr.mxu0 0.0
  %473 = vmatpush1.msra.mxu0 0.0
  %474 = vmatprep.subr.mxu0 0.0
  %475 = vmatpush1.msra.mxu0 0.0
  %476 = vmatprep.subr.mxu0 0.0
  %477 = vmatpush1.msra.mxu0 0.0
  %478 = vmatprep.subr.mxu0 0.0
  %479 = vmatpush1.msra.mxu0 0.0
  %480 = vmatprep.subr.mxu0 0.0
  %481 = vmatpush1.msra.mxu0 0.0
  %482 = vmatprep.subr.mxu0 0.0
  %483 = vmatpush1.msra.mxu0 0.0
  %484 = vmatprep.subr.mxu0 0.0
  %485 = vmatpush1.msra.mxu0 0.0
  %486 = vmatprep.subr.mxu0 0.0
  %487 = vmatpush1.msra.mxu0 0.0
  %488 = vmatprep.subr.mxu0 0.0
  %489 = vmatpush1.msra.mxu0 0.0
  %490 = vmatprep.subr.mxu0 0.0
  %491 = vmatpush1.msra.mxu0 0.0
  %492 = vmatprep.subr.mxu0 0.0
  %493 = vmatpush1.msra.mxu0 0.0
  %494 = vmatprep.subr.mxu0 0.0
  %495 = vmatpush1.msra.mxu0 0.0
  %496 = vmatprep.subr.mxu0 0.0
  %497 = vmatpush1.msra.mxu0 0.0
  %498 = vmatprep.mubr.f32.mxu0 0.0
  %499 = vmatmul.mubr.f32.gmra.mrb[0].mxu0 %v429
  %v500 = vpop.f32.mrb[0].mxu0
  %v501 = vadd.f32 0.0, %v500
  %v502 = vpop.f32.mrb[0].mxu0
  %503 = vmatprep.mubr.f32.mxu0 0.0
  %504 = vmatmul.mubr.f32.gmra.mrb[0].mxu0 %v432
  %v505 = vpop.f32.mrb[0].mxu0
  %v506 = vadd.f32 0.0, %v505
  %v507 = vpop.f32.mrb[0].mxu0
  %508 = vdwg.mxu0
  %v509 = vld [vmem:[%s2 + $0x48] sm:$0xff]
  %v510 = vld [vmem:[%s2 + $0x50] sm:$0xff]
  %511 = vrot.lane.b32.xlu0 %v298, 112
  %v512 = vpop.permute.xlu0 %511
  %513 = vrot.lane.b32.xlu0 %v303, 112
  %v514 = vpop.permute.xlu0 %513
  %515 = vrot.lane.b32.xlu0 %v298, 80
  %v516 = vpop.permute.xlu0 %515
  %517 = vrot.lane.b32.xlu0 %v303, 80
  %v518 = vpop.permute.xlu0 %517
  %v519 = vsel %vm312, %v512, 0
  %v521 = vsel %vm312, %v514, 0
  %v523 = vsel %vm312, %v516, 0
  %v525 = vsel %vm312, %v518, 0
  %527 = vmatprep.subr.mxu0 0.0
  %528 = vmatpush1.xpose.msra.mxu0 %v523
  %529 = vmatprep.subr.mxu0 0.0
  %530 = vmatpush1.xpose.msra.mxu0 %v525
  %531 = vmatprep.subr.mxu0 0.0
  %532 = vmatpush1.xpose.msra.mxu0 0.0
  %533 = vmatprep.subr.mxu0 0.0
  %534 = vmatpush1.xpose.msra.mxu0 0.0
  %535 = vmatprep.subr.mxu0 0.0
  %536 = vmatpush1.xpose.msra.mxu0 0.0
  %537 = vmatprep.subr.mxu0 0.0
  %538 = vmatpush1.xpose.msra.mxu0 0.0
  %539 = vmatprep.subr.mxu0 0.0
  %540 = vmatpush1.xpose.msra.mxu0 0.0
  %541 = vmatprep.subr.mxu0 0.0
  %542 = vmatpush1.xpose.msra.mxu0 0.0
  %543 = vmatprep.subr.mxu0 0.0
  %544 = vmatpush1.xpose.msra.mxu0 0.0
  %545 = vmatprep.subr.mxu0 0.0
  %546 = vmatpush1.xpose.msra.mxu0 0.0
  %547 = vmatprep.subr.mxu0 0.0
  %548 = vmatpush1.xpose.msra.mxu0 0.0
  %549 = vmatprep.subr.mxu0 0.0
  %550 = vmatpush1.xpose.msra.mxu0 0.0
  %551 = vmatprep.subr.mxu0 0.0
  %552 = vmatpush1.xpose.msra.mxu0 0.0
  %553 = vmatprep.subr.mxu0 0.0
  %554 = vmatpush1.xpose.msra.mxu0 0.0
  %555 = vmatprep.subr.mxu0 0.0
  %556 = vmatpush1.xpose.msra.mxu0 0.0
  %557 = vmatprep.subr.mxu0 0.0
  %558 = vmatpush1.xpose.msra.mxu0 0.0
  %559 = vmatprep.subr.mxu0 0.0
  %560 = vmatpush1.xpose.msra.mxu0 0.0
  %561 = vmatprep.subr.mxu0 0.0
  %562 = vmatpush1.xpose.msra.mxu0 0.0
  %563 = vmatprep.subr.mxu0 0.0
  %564 = vmatpush1.xpose.msra.mxu0 0.0
  %565 = vmatprep.subr.mxu0 0.0
  %566 = vmatpush1.xpose.msra.mxu0 0.0
  %567 = vmatprep.subr.mxu0 0.0
  %568 = vmatpush1.xpose.msra.mxu0 0.0
  %569 = vmatprep.subr.mxu0 0.0
  %570 = vmatpush1.xpose.msra.mxu0 0.0
  %571 = vmatprep.subr.mxu0 0.0
  %572 = vmatpush1.xpose.msra.mxu0 0.0
  %573 = vmatprep.subr.mxu0 0.0
  %574 = vmatpush1.xpose.msra.mxu0 0.0
  %575 = vmatprep.subr.mxu0 0.0
  %576 = vmatpush1.xpose.msra.mxu0 0.0
  %577 = vmatprep.subr.mxu0 0.0
  %578 = vmatpush1.xpose.msra.mxu0 0.0
  %579 = vmatprep.subr.mxu0 0.0
  %580 = vmatpush1.xpose.msra.mxu0 0.0
  %581 = vmatprep.subr.mxu0 0.0
  %582 = vmatpush1.xpose.msra.mxu0 0.0
  %583 = vmatprep.subr.mxu0 0.0
  %584 = vmatpush1.xpose.msra.mxu0 0.0
  %585 = vmatprep.subr.mxu0 0.0
  %586 = vmatpush1.xpose.msra.mxu0 0.0
  %587 = vmatprep.subr.mxu0 0.0
  %588 = vmatpush1.xpose.msra.mxu0 0.0
  %589 = vmatprep.subr.mxu0 0.0
  %590 = vmatpush1.xpose.msra.mxu0 0.0
  %591 = vmatprep.mubr.f32.mxu0 0.0
  %592 = vmatmul.mubr.f32.gmra.mrb[0].mxu0 %v519
  %v593 = vpop.f32.mrb[0].mxu0
  %v594 = vadd.f32 0.0, %v593
  %v595 = vpop.f32.mrb[0].mxu0
  %596 = vmatprep.mubr.f32.mxu0 0.0
  %597 = vmatmul.mubr.f32.gmra.mrb[0].mxu0 %v521
  %v598 = vpop.f32.mrb[0].mxu0
  %v599 = vadd.f32 0.0, %v598
  %v600 = vpop.f32.mrb[0].mxu0
  %601 = vdwg.mxu0
  %v602 = vmul.f32 %v594, 0.25
  %v603 = vmul.f32 %v599, 0.25
  %v604 = vadd.f32 %v602, %v214
  %v605 = vadd.f32 %v603, %v215
  %v606 = vsel %vm312, %v604, -inf
  %607 = vmax.xlane.f32.xlu0 %v606
  %v608 = vpop.xlane.xlu0 %607
  %v609 = vsel %vm312, %v605, -inf
  %610 = vmax.xlane.f32.xlu0 %v609
  %v611 = vpop.xlane.xlu0 %610
  %v612 = vsub.f32 %v604, %v608
  %v613 = vsub.f32 %v605, %v611
  %v614 = vmul.f32 %v612, 1.442695
  %v615 = vpow.pop %v614
  %v616 = vmul.f32 %v613, 1.442695
  %v617 = vpow.pop %v616
  %v618 = vsel %vm312, %v615, 0.0
  %619 = vadd.xlane.f32.xlu0 %v618
  %v620 = vpop.xlane.xlu0 %619
  %v621 = vsel %vm312, %v617, 0.0
  %622 = vadd.xlane.f32.xlu0 %v621
  %v623 = vpop.xlane.xlu0 %622
  %v624 = vrcp.pop %v620
  %v625 = vmul.f32 %v615, %v624
  %v626 = vrcp.pop %v623
  %v627 = vmul.f32 %v617, %v626
  %628 = vrot.lane.b32.xlu0 %v298, 48
  %v629 = vpop.permute.xlu0 %628
  %630 = vrot.lane.b32.xlu0 %v303, 48
  %v631 = vpop.permute.xlu0 %630
  %v635 = vsel %vm312, %v625, 0
  %v638 = vsel %vm312, %v627, 0
  %640 = vmatprep.subr.mxu0 0.0
  %641 = vmatpush1.msra.mxu0 %v629
  %642 = vmatprep.subr.mxu0 0.0
  %643 = vmatpush1.msra.mxu0 %v631
  %644 = vmatprep.subr.mxu0 0.0
  %645 = vmatpush1.msra.mxu0 0.0
  %646 = vmatprep.subr.mxu0 0.0
  %647 = vmatpush1.msra.mxu0 0.0
  %648 = vmatprep.subr.mxu0 0.0
  %649 = vmatpush1.msra.mxu0 0.0
  %650 = vmatprep.subr.mxu0 0.0
  %651 = vmatpush1.msra.mxu0 0.0
  %652 = vmatprep.subr.mxu0 0.0
  %653 = vmatpush1.msra.mxu0 0.0
  %654 = vmatprep.subr.mxu0 0.0
  %655 = vmatpush1.msra.mxu0 0.0
  %656 = vmatprep.subr.mxu0 0.0
  %657 = vmatpush1.msra.mxu0 0.0
  %658 = vmatprep.subr.mxu0 0.0
  %659 = vmatpush1.msra.mxu0 0.0
  %660 = vmatprep.subr.mxu0 0.0
  %661 = vmatpush1.msra.mxu0 0.0
  %662 = vmatprep.subr.mxu0 0.0
  %663 = vmatpush1.msra.mxu0 0.0
  %664 = vmatprep.subr.mxu0 0.0
  %665 = vmatpush1.msra.mxu0 0.0
  %666 = vmatprep.subr.mxu0 0.0
  %667 = vmatpush1.msra.mxu0 0.0
  %668 = vmatprep.subr.mxu0 0.0
  %669 = vmatpush1.msra.mxu0 0.0
  %670 = vmatprep.subr.mxu0 0.0
  %671 = vmatpush1.msra.mxu0 0.0
  %672 = vmatprep.subr.mxu0 0.0
  %673 = vmatpush1.msra.mxu0 0.0
  %674 = vmatprep.subr.mxu0 0.0
  %675 = vmatpush1.msra.mxu0 0.0
  %676 = vmatprep.subr.mxu0 0.0
  %677 = vmatpush1.msra.mxu0 0.0
  %678 = vmatprep.subr.mxu0 0.0
  %679 = vmatpush1.msra.mxu0 0.0
  %680 = vmatprep.subr.mxu0 0.0
  %681 = vmatpush1.msra.mxu0 0.0
  %682 = vmatprep.subr.mxu0 0.0
  %683 = vmatpush1.msra.mxu0 0.0
  %684 = vmatprep.subr.mxu0 0.0
  %685 = vmatpush1.msra.mxu0 0.0
  %686 = vmatprep.subr.mxu0 0.0
  %687 = vmatpush1.msra.mxu0 0.0
  %688 = vmatprep.subr.mxu0 0.0
  %689 = vmatpush1.msra.mxu0 0.0
  %690 = vmatprep.subr.mxu0 0.0
  %691 = vmatpush1.msra.mxu0 0.0
  %692 = vmatprep.subr.mxu0 0.0
  %693 = vmatpush1.msra.mxu0 0.0
  %694 = vmatprep.subr.mxu0 0.0
  %695 = vmatpush1.msra.mxu0 0.0
  %696 = vmatprep.subr.mxu0 0.0
  %697 = vmatpush1.msra.mxu0 0.0
  %698 = vmatprep.subr.mxu0 0.0
  %699 = vmatpush1.msra.mxu0 0.0
  %700 = vmatprep.subr.mxu0 0.0
  %701 = vmatpush1.msra.mxu0 0.0
  %702 = vmatprep.subr.mxu0 0.0
  %703 = vmatpush1.msra.mxu0 0.0
  %704 = vmatprep.mubr.f32.mxu0 0.0
  %705 = vmatmul.mubr.f32.gmra.mrb[0].mxu0 %v635
  %v706 = vpop.f32.mrb[0].mxu0
  %v707 = vadd.f32 0.0, %v706
  %v708 = vpop.f32.mrb[0].mxu0
  %709 = vmatprep.mubr.f32.mxu0 0.0
  %710 = vmatmul.mubr.f32.gmra.mrb[0].mxu0 %v638
  %v711 = vpop.f32.mrb[0].mxu0
  %v712 = vadd.f32 0.0, %v711
  %v713 = vpop.f32.mrb[0].mxu0
  %714 = vdwg.mxu0
  %v715 = vld [vmem:[%s2 + $0x58] sm:$0xff]
  %v716 = vld [vmem:[%s2 + $0x60] sm:$0xff]
  %v718 = vsel %vm312, %v707, 0
  %v721 = vsel %vm312, %v712, 0
  %723 = vmatprep.subr.mxu0 0.0
  %724 = vmatpush1.msra.mxu0 %v715
  %725 = vmatprep.subr.mxu0 0.0
  %726 = vmatpush1.msra.mxu0 %v716
  %727 = vmatprep.subr.mxu0 0.0
  %728 = vmatpush1.msra.mxu0 0.0
  %729 = vmatprep.subr.mxu0 0.0
  %730 = vmatpush1.msra.mxu0 0.0
  %731 = vmatprep.subr.mxu0 0.0
  %732 = vmatpush1.msra.mxu0 0.0
  %733 = vmatprep.subr.mxu0 0.0
  %734 = vmatpush1.msra.mxu0 0.0
  %735 = vmatprep.subr.mxu0 0.0
  %736 = vmatpush1.msra.mxu0 0.0
  %737 = vmatprep.subr.mxu0 0.0
  %738 = vmatpush1.msra.mxu0 0.0
  %739 = vmatprep.subr.mxu0 0.0
  %740 = vmatpush1.msra.mxu0 0.0
  %741 = vmatprep.subr.mxu0 0.0
  %742 = vmatpush1.msra.mxu0 0.0
  %743 = vmatprep.subr.mxu0 0.0
  %744 = vmatpush1.msra.mxu0 0.0
  %745 = vmatprep.subr.mxu0 0.0
  %746 = vmatpush1.msra.mxu0 0.0
  %747 = vmatprep.subr.mxu0 0.0
  %748 = vmatpush1.msra.mxu0 0.0
  %749 = vmatprep.subr.mxu0 0.0
  %750 = vmatpush1.msra.mxu0 0.0
  %751 = vmatprep.subr.mxu0 0.0
  %752 = vmatpush1.msra.mxu0 0.0
  %753 = vmatprep.subr.mxu0 0.0
  %754 = vmatpush1.msra.mxu0 0.0
  %755 = vmatprep.subr.mxu0 0.0
  %756 = vmatpush1.msra.mxu0 0.0
  %757 = vmatprep.subr.mxu0 0.0
  %758 = vmatpush1.msra.mxu0 0.0
  %759 = vmatprep.subr.mxu0 0.0
  %760 = vmatpush1.msra.mxu0 0.0
  %761 = vmatprep.subr.mxu0 0.0
  %762 = vmatpush1.msra.mxu0 0.0
  %763 = vmatprep.subr.mxu0 0.0
  %764 = vmatpush1.msra.mxu0 0.0
  %765 = vmatprep.subr.mxu0 0.0
  %766 = vmatpush1.msra.mxu0 0.0
  %767 = vmatprep.subr.mxu0 0.0
  %768 = vmatpush1.msra.mxu0 0.0
  %769 = vmatprep.subr.mxu0 0.0
  %770 = vmatpush1.msra.mxu0 0.0
  %771 = vmatprep.subr.mxu0 0.0
  %772 = vmatpush1.msra.mxu0 0.0
  %773 = vmatprep.subr.mxu0 0.0
  %774 = vmatpush1.msra.mxu0 0.0
  %775 = vmatprep.subr.mxu0 0.0
  %776 = vmatpush1.msra.mxu0 0.0
  %777 = vmatprep.subr.mxu0 0.0
  %778 = vmatpush1.msra.mxu0 0.0
  %779 = vmatprep.subr.mxu0 0.0
  %780 = vmatpush1.msra.mxu0 0.0
  %781 = vmatprep.subr.mxu0 0.0
  %782 = vmatpush1.msra.mxu0 0.0
  %783 = vmatprep.subr.mxu0 0.0
  %784 = vmatpush1.msra.mxu0 0.0
  %785 = vmatprep.subr.mxu0 0.0
  %786 = vmatpush1.msra.mxu0 0.0
  %787 = vmatprep.mubr.f32.mxu0 0.0
  %788 = vmatmul.mubr.f32.gmra.mrb[0].mxu0 %v718
  %v789 = vpop.f32.mrb[0].mxu0
  %v790 = vadd.f32 0.0, %v789
  %v791 = vpop.f32.mrb[0].mxu0
  %792 = vmatprep.mubr.f32.mxu0 0.0
  %793 = vmatmul.mubr.f32.gmra.mrb[0].mxu0 %v721
  %v794 = vpop.f32.mrb[0].mxu0
  %v795 = vadd.f32 0.0, %v794
  %v796 = vpop.f32.mrb[0].mxu0
  %797 = vdwg.mxu0
  %v799 = vsel %vm312, %v501, 0
  %v802 = vsel %vm312, %v506, 0
  %804 = vmatprep.subr.mxu0 0.0
  %805 = vmatpush1.msra.mxu0 %v509
  %806 = vmatprep.subr.mxu0 0.0
  %807 = vmatpush1.msra.mxu0 %v510
  %808 = vmatprep.subr.mxu0 0.0
  %809 = vmatpush1.msra.mxu0 0.0
  %810 = vmatprep.subr.mxu0 0.0
  %811 = vmatpush1.msra.mxu0 0.0
  %812 = vmatprep.subr.mxu0 0.0
  %813 = vmatpush1.msra.mxu0 0.0
  %814 = vmatprep.subr.mxu0 0.0
  %815 = vmatpush1.msra.mxu0 0.0
  %816 = vmatprep.subr.mxu0 0.0
  %817 = vmatpush1.msra.mxu0 0.0
  %818 = vmatprep.subr.mxu0 0.0
  %819 = vmatpush1.msra.mxu0 0.0
  %820 = vmatprep.subr.mxu0 0.0
  %821 = vmatpush1.msra.mxu0 0.0
  %822 = vmatprep.subr.mxu0 0.0
  %823 = vmatpush1.msra.mxu0 0.0
  %824 = vmatprep.subr.mxu0 0.0
  %825 = vmatpush1.msra.mxu0 0.0
  %826 = vmatprep.subr.mxu0 0.0
  %827 = vmatpush1.msra.mxu0 0.0
  %828 = vmatprep.subr.mxu0 0.0
  %829 = vmatpush1.msra.mxu0 0.0
  %830 = vmatprep.subr.mxu0 0.0
  %831 = vmatpush1.msra.mxu0 0.0
  %832 = vmatprep.subr.mxu0 0.0
  %833 = vmatpush1.msra.mxu0 0.0
  %834 = vmatprep.subr.mxu0 0.0
  %835 = vmatpush1.msra.mxu0 0.0
  %836 = vmatprep.subr.mxu0 0.0
  %837 = vmatpush1.msra.mxu0 0.0
  %838 = vmatprep.subr.mxu0 0.0
  %839 = vmatpush1.msra.mxu0 0.0
  %840 = vmatprep.subr.mxu0 0.0
  %841 = vmatpush1.msra.mxu0 0.0
  %842 = vmatprep.subr.mxu0 0.0
  %843 = vmatpush1.msra.mxu0 0.0
  %844 = vmatprep.subr.mxu0 0.0
  %845 = vmatpush1.msra.mxu0 0.0
  %846 = vmatprep.subr.mxu0 0.0
  %847 = vmatpush1.msra.mxu0 0.0
  %848 = vmatprep.subr.mxu0 0.0
  %849 = vmatpush1.msra.mxu0 0.0
  %850 = vmatprep.subr.mxu0 0.0
  %851 = vmatpush1.msra.mxu0 0.0
  %852 = vmatprep.subr.mxu0 0.0
  %853 = vmatpush1.msra.mxu0 0.0
  %854 = vmatprep.subr.mxu0 0.0
  %855 = vmatpush1.msra.mxu0 0.0
  %856 = vmatprep.subr.mxu0 0.0
  %857 = vmatpush1.msra.mxu0 0.0
  %858 = vmatprep.subr.mxu0 0.0
  %859 = vmatpush1.msra.mxu0 0.0
  %860 = vmatprep.subr.mxu0 0.0
  %861 = vmatpush1.msra.mxu0 0.0
  %862 = vmatprep.subr.mxu0 0.0
  %863 = vmatpush1.msra.mxu0 0.0
  %864 = vmatprep.subr.mxu0 0.0
  %865 = vmatpush1.msra.mxu0 0.0
  %866 = vmatprep.subr.mxu0 0.0
  %867 = vmatpush1.msra.mxu0 0.0
  %868 = vmatprep.mubr.f32.mxu0 0.0
  %869 = vmatmul.mubr.f32.gmra.mrb[0].mxu0 %v799
  %v870 = vpop.f32.mrb[0].mxu0
  %v871 = vadd.f32 %v790, %v870
  %v872 = vpop.f32.mrb[0].mxu0
  %873 = vmatprep.mubr.f32.mxu0 0.0
  %874 = vmatmul.mubr.f32.gmra.mrb[0].mxu0 %v802
  %v875 = vpop.f32.mrb[0].mxu0
  %v876 = vadd.f32 %v795, %v875
  %v877 = vpop.f32.mrb[0].mxu0
  %878 = vdwg.mxu0
  %v879 = vld [vmem:[%s6 + $0x3] sm:$0x1]
  %v880 = vlaneseq
  %v881 = vshrl.u32 %v880, 7
  %v882 = vsub.s32 0, %v881
  %v883 = vrot.slane %v879, %v882
  %v884 = vadd.f32 %v871, %v883
  %v885 = vadd.f32 %v876, %v883
  %v886 = vadd.f32 %v173, %v884
  %v887 = vadd.f32 %v174, %v885
  %v888 = vsel %vm133, %v886, 0.0
  %889 = vadd.xlane.f32.xlu0 %v888
  %v890 = vpop.xlane.xlu0 %889
  %v891 = vsel %vm133, %v887, 0.0
  %892 = vadd.xlane.f32.xlu0 %v891
  %v893 = vpop.xlane.xlu0 %892
  %v894 = vmul.f32 %v890, %v140
  %v895 = vmul.f32 %v893, %v140
  %v896 = vsub.f32 %v886, %v894
  %v897 = vsub.f32 %v887, %v895
  %v898 = vmul.f32 %v896, %v896
  %v899 = vmul.f32 %v897, %v897
  %v900 = vsel %vm133, %v898, 0.0
  %901 = vadd.xlane.f32.xlu0 %v900
  %v902 = vpop.xlane.xlu0 %901
  %v903 = vsel %vm133, %v899, 0.0
  %904 = vadd.xlane.f32.xlu0 %v903
  %v905 = vpop.xlane.xlu0 %904
  %v906 = vmul.f32 %v902, %v140
  %v907 = vmul.f32 %v905, %v140
  %v908 = vadd.f32 %v906, 1e-12
  %v909 = vadd.f32 %v907, 1e-12
  %v910 = vrsqrt.pop %v908
  %v911 = vrsqrt.pop %v909
  %v912 = vmul.f32 %v896, %v910
  %v913 = vmul.f32 %v897, %v911
  %v914 = vld [vmem:[%s6 + $0x4] sm:$0x1]
  %v915 = vlaneseq
  %v916 = vshrl.u32 %v915, 7
  %v917 = vsub.s32 0, %v916
  %v918 = vrot.slane %v914, %v917
  %v919 = vmul.f32 %v912, %v918
  %v920 = vmul.f32 %v913, %v918
  %v921 = vld [vmem:[%s6 + $0x5] sm:$0x1]
  %v922 = vlaneseq
  %v923 = vshrl.u32 %v922, 7
  %v924 = vsub.s32 0, %v923
  %v925 = vrot.slane %v921, %v924
  %v926 = vadd.f32 %v919, %v925
  %v927 = vadd.f32 %v920, %v925
  %v928 = vld [vmem:[%s4] sm:$0xff]
  %v929 = vld [vmem:[%s4 + $0x8] sm:$0xff]
  %v930 = vld [vmem:[%s4 + $0x10] sm:$0xff]
  %v931 = vld [vmem:[%s4 + $0x18] sm:$0xff]
  %v932 = vld [vmem:[%s6 + $0x6] sm:$0x1]
  %v933 = vlaneseq
  %v934 = vshrl.u32 %v933, 7
  %v935 = vsub.s32 0, %v934
  %v936 = vrot.slane %v932, %v935
  %v938 = vsel %vm133, %v926, 0
  %v941 = vsel %vm133, %v927, 0
  %943 = vmatprep.subr.mxu0 0.0
  %944 = vmatpush1.msra.mxu0 %v928
  %945 = vmatprep.subr.mxu0 0.0
  %946 = vmatpush1.msra.mxu0 %v929
  %947 = vmatprep.subr.mxu0 0.0
  %948 = vmatpush1.msra.mxu0 %v930
  %949 = vmatprep.subr.mxu0 0.0
  %950 = vmatpush1.msra.mxu0 %v931
  %951 = vmatprep.subr.mxu0 0.0
  %952 = vmatpush1.msra.mxu0 0.0
  %953 = vmatprep.subr.mxu0 0.0
  %954 = vmatpush1.msra.mxu0 0.0
  %955 = vmatprep.subr.mxu0 0.0
  %956 = vmatpush1.msra.mxu0 0.0
  %957 = vmatprep.subr.mxu0 0.0
  %958 = vmatpush1.msra.mxu0 0.0
  %959 = vmatprep.subr.mxu0 0.0
  %960 = vmatpush1.msra.mxu0 0.0
  %961 = vmatprep.subr.mxu0 0.0
  %962 = vmatpush1.msra.mxu0 0.0
  %963 = vmatprep.subr.mxu0 0.0
  %964 = vmatpush1.msra.mxu0 0.0
  %965 = vmatprep.subr.mxu0 0.0
  %966 = vmatpush1.msra.mxu0 0.0
  %967 = vmatprep.subr.mxu0 0.0
  %968 = vmatpush1.msra.mxu0 0.0
  %969 = vmatprep.subr.mxu0 0.0
  %970 = vmatpush1.msra.mxu0 0.0
  %971 = vmatprep.subr.mxu0 0.0
  %972 = vmatpush1.msra.mxu0 0.0
  %973 = vmatprep.subr.mxu0 0.0
  %974 = vmatpush1.msra.mxu0 0.0
  %975 = vmatprep.subr.mxu0 0.0
  %976 = vmatpush1.msra.mxu0 0.0
  %977 = vmatprep.subr.mxu0 0.0
  %978 = vmatpush1.msra.mxu0 0.0
  %979 = vmatprep.subr.mxu0 0.0
  %980 = vmatpush1.msra.mxu0 0.0
  %981 = vmatprep.subr.mxu0 0.0
  %982 = vmatpush1.msra.mxu0 0.0
  %983 = vmatprep.subr.mxu0 0.0
  %984 = vmatpush1.msra.mxu0 0.0
  %985 = vmatprep.subr.mxu0 0.0
  %986 = vmatpush1.msra.mxu0 0.0
  %987 = vmatprep.subr.mxu0 0.0
  %988 = vmatpush1.msra.mxu0 0.0
  %989 = vmatprep.subr.mxu0 0.0
  %990 = vmatpush1.msra.mxu0 0.0
  %991 = vmatprep.subr.mxu0 0.0
  %992 = vmatpush1.msra.mxu0 0.0
  %993 = vmatprep.subr.mxu0 0.0
  %994 = vmatpush1.msra.mxu0 0.0
  %995 = vmatprep.subr.mxu0 0.0
  %996 = vmatpush1.msra.mxu0 0.0
  %997 = vmatprep.subr.mxu0 0.0
  %998 = vmatpush1.msra.mxu0 0.0
  %999 = vmatprep.subr.mxu0 0.0
  %1000 = vmatpush1.msra.mxu0 0.0
  %1001 = vmatprep.subr.mxu0 0.0
  %1002 = vmatpush1.msra.mxu0 0.0
  %1003 = vmatprep.subr.mxu0 0.0
  %1004 = vmatpush1.msra.mxu0 0.0
  %1005 = vmatprep.subr.mxu0 0.0
  %1006 = vmatpush1.msra.mxu0 0.0
  %1007 = vmatprep.mubr.f32.mxu0 0.0
  %1008 = vmatmul.mubr.f32.gmra.mrb[0].mxu0 %v938
  %v1009 = vpop.f32.mrb[0].mxu0
  %v1010 = vadd.f32 %v936, %v1009
  %v1011 = vpop.f32.mrb[0].mxu0
  %1012 = vmatprep.mubr.f32.mxu0 0.0
  %1013 = vmatmul.mubr.f32.gmra.mrb[0].mxu0 %v941
  %v1014 = vpop.f32.mrb[0].mxu0
  %v1015 = vadd.f32 %v936, %v1014
  %v1016 = vpop.f32.mrb[0].mxu0
  %1017 = vdwg.mxu0
  %v1018 = vmul.f32 %v1010, 0.5
  %v1019 = vmul.f32 %v1015, 0.5
  %v1020 = vmul.f32 %v1010, 0.044715
  %v1021 = vmul.f32 %v1015, 0.044715
  %v1022 = vmul.f32 %v1020, %v1010
  %v1023 = vmul.f32 %v1021, %v1015
  %v1024 = vmul.f32 %v1022, %v1010
  %v1025 = vmul.f32 %v1023, %v1015
  %v1026 = vadd.f32 %v1010, %v1024
  %v1027 = vadd.f32 %v1015, %v1025
  %v1028 = vmul.f32 %v1026, 0.7978846
  %v1029 = vmul.f32 %v1027, 0.7978846
  %v1030 = vtanh.pop %v1028
  %v1031 = vtanh.pop %v1029
  %v1032 = vadd.f32 %v1030, 1.0
  %v1033 = vadd.f32 %v1031, 1.0
  %v1034 = vmul.f32 %v1018, %v1032
  %v1035 = vmul.f32 %v1019, %v1033
  %v1036 = vld [vmem:[%s2 + $0x88] sm:$0xff]
  %v1037 = vld [vmem:[%s2 + $0x90] sm:$0xff]
  %v1038 = vld [vmem:[%s2 + $0x98] sm:$0xff]
  %v1039 = vld [vmem:[%s2 + $0xa0] sm:$0xff]
  %v1040 = vld [vmem:[%s2 + $0xa8] sm:$0xff]
  %v1041 = vld [vmem:[%s2 + $0xb0] sm:$0xff]
  %v1042 = vld [vmem:[%s2 + $0xb8] sm:$0xff]
  %v1043 = vld [vmem:[%s2 + $0xc0] sm:$0xff]
  %v1044 = vld [vmem:[%s6 + $0x7] sm:$0x1]
  %v1045 = vlaneseq
  %v1046 = vshrl.u32 %v1045, 7
  %v1047 = vsub.s32 0, %v1046
  %v1048 = vrot.slane %v1044, %v1047
  %v1050 = vsel %vm51, %v1034, 0
  %v1053 = vsel %vm51, %v1035, 0
  %1055 = vmatprep.subr.mxu0 0.0
  %1056 = vmatpush1.msra.mxu0 %v1036
  %1057 = vmatprep.subr.mxu0 0.0
  %1058 = vmatpush1.msra.mxu0 %v1037
  %1059 = vmatprep.subr.mxu0 0.0
  %1060 = vmatpush1.msra.mxu0 %v1038
  %1061 = vmatprep.subr.mxu0 0.0
  %1062 = vmatpush1.msra.mxu0 %v1039
  %1063 = vmatprep.subr.mxu0 0.0
  %1064 = vmatpush1.msra.mxu0 %v1040
  %1065 = vmatprep.subr.mxu0 0.0
  %1066 = vmatpush1.msra.mxu0 %v1041
  %1067 = vmatprep.subr.mxu0 0.0
  %1068 = vmatpush1.msra.mxu0 %v1042
  %1069 = vmatprep.subr.mxu0 0.0
  %1070 = vmatpush1.msra.mxu0 %v1043
  %1071 = vmatprep.subr.mxu0 0.0
  %1072 = vmatpush1.msra.mxu0 0.0
  %1073 = vmatprep.subr.mxu0 0.0
  %1074 = vmatpush1.msra.mxu0 0.0
  %1075 = vmatprep.subr.mxu0 0.0
  %1076 = vmatpush1.msra.mxu0 0.0
  %1077 = vmatprep.subr.mxu0 0.0
  %1078 = vmatpush1.msra.mxu0 0.0
  %1079 = vmatprep.subr.mxu0 0.0
  %1080 = vmatpush1.msra.mxu0 0.0
  %1081 = vmatprep.subr.mxu0 0.0
  %1082 = vmatpush1.msra.mxu0 0.0
  %1083 = vmatprep.subr.mxu0 0.0
  %1084 = vmatpush1.msra.mxu0 0.0
  %1085 = vmatprep.subr.mxu0 0.0
  %1086 = vmatpush1.msra.mxu0 0.0
  %1087 = vmatprep.subr.mxu0 0.0
  %1088 = vmatpush1.msra.mxu0 0.0
  %1089 = vmatprep.subr.mxu0 0.0
  %1090 = vmatpush1.msra.mxu0 0.0
  %1091 = vmatprep.subr.mxu0 0.0
  %1092 = vmatpush1.msra.mxu0 0.0
  %1093 = vmatprep.subr.mxu0 0.0
  %1094 = vmatpush1.msra.mxu0 0.0
  %1095 = vmatprep.subr.mxu0 0.0
  %1096 = vmatpush1.msra.mxu0 0.0
  %1097 = vmatprep.subr.mxu0 0.0
  %1098 = vmatpush1.msra.mxu0 0.0
  %1099 = vmatprep.subr.mxu0 0.0
  %1100 = vmatpush1.msra.mxu0 0.0
  %1101 = vmatprep.subr.mxu0 0.0
  %1102 = vmatpush1.msra.mxu0 0.0
  %1103 = vmatprep.subr.mxu0 0.0
  %1104 = vmatpush1.msra.mxu0 0.0
  %1105 = vmatprep.subr.mxu0 0.0
  %1106 = vmatpush1.msra.mxu0 0.0
  %1107 = vmatprep.subr.mxu0 0.0
  %1108 = vmatpush1.msra.mxu0 0.0
  %1109 = vmatprep.subr.mxu0 0.0
  %1110 = vmatpush1.msra.mxu0 0.0
  %1111 = vmatprep.subr.mxu0 0.0
  %1112 = vmatpush1.msra.mxu0 0.0
  %1113 = vmatprep.subr.mxu0 0.0
  %1114 = vmatpush1.msra.mxu0 0.0
  %1115 = vmatprep.subr.mxu0 0.0
  %1116 = vmatpush1.msra.mxu0 0.0
  %1117 = vmatprep.subr.mxu0 0.0
  %1118 = vmatpush1.msra.mxu0 0.0
  %1119 = vmatprep.mubr.f32.mxu0 0.0
  %1120 = vmatmul.mubr.f32.gmra.mrb[0].mxu0 %v1050
  %v1121 = vpop.f32.mrb[0].mxu0
  %v1122 = vadd.f32 %v1048, %v1121
  %v1123 = vpop.f32.mrb[0].mxu0
  %1124 = vmatprep.mubr.f32.mxu0 0.0
  %1125 = vmatmul.mubr.f32.gmra.mrb[0].mxu0 %v1053
  %v1126 = vpop.f32.mrb[0].mxu0
  %v1127 = vadd.f32 %v1048, %v1126
  %v1128 = vpop.f32.mrb[0].mxu0
  %1129 = vdwg.mxu0
  %v1130 = vadd.f32 %v926, %v1122
  %v1131 = vadd.f32 %v927, %v1127
  %v1132 = vsel %vm133, %v1130, 0.0
  %1133 = vadd.xlane.f32.xlu0 %v1132
  %v1134 = vpop.xlane.xlu0 %1133
  %v1135 = vsel %vm133, %v1131, 0.0
  %1136 = vadd.xlane.f32.xlu0 %v1135
  %v1137 = vpop.xlane.xlu0 %1136
  %v1138 = vmul.f32 %v1134, %v140
  %v1139 = vmul.f32 %v1137, %v140
  %v1140 = vsub.f32 %v1130, %v1138
  %v1141 = vsub.f32 %v1131, %v1139
  %v1142 = vmul.f32 %v1140, %v1140
  %v1143 = vmul.f32 %v1141, %v1141
  %v1144 = vsel %vm133, %v1142, 0.0
  %1145 = vadd.xlane.f32.xlu0 %v1144
  %v1146 = vpop.xlane.xlu0 %1145
  %v1147 = vsel %vm133, %v1143, 0.0
  %1148 = vadd.xlane.f32.xlu0 %v1147
  %v1149 = vpop.xlane.xlu0 %1148
  %v1150 = vmul.f32 %v1146, %v140
  %v1151 = vmul.f32 %v1149, %v140
  %v1152 = vadd.f32 %v1150, 1e-12
  %v1153 = vadd.f32 %v1151, 1e-12
  %v1154 = vrsqrt.pop %v1152
  %v1155 = vrsqrt.pop %v1153
  %v1156 = vmul.f32 %v1140, %v1154
  %v1157 = vmul.f32 %v1141, %v1155
  %v1158 = vld [vmem:[%s6 + $0x8] sm:$0x1]
  %v1159 = vlaneseq
  %v1160 = vshrl.u32 %v1159, 7
  %v1161 = vsub.s32 0, %v1160
  %v1162 = vrot.slane %v1158, %v1161
  %v1163 = vmul.f32 %v1156, %v1162
  %v1164 = vmul.f32 %v1157, %v1162
  %v1165 = vld [vmem:[%s6 + $0x9] sm:$0x1]
  %v1166 = vlaneseq
  %v1167 = vshrl.u32 %v1166, 7
  %v1168 = vsub.s32 0, %v1167
  %v1169 = vrot.slane %v1165, %v1168
  %v1170 = vadd.f32 %v1163, %v1169
  %v1171 = vadd.f32 %v1164, %v1169
  %v1172 = vld [vmem:[%s3 + $0x20] sm:$0xff]
  %v1173 = vld [vmem:[%s3 + $0x28] sm:$0xff]
  %v1174 = vld [vmem:[%s3 + $0x30] sm:$0xff]
  %v1175 = vld [vmem:[%s3 + $0x38] sm:$0xff]
  %v1176 = vld [vmem:[%s6 + $0xa] sm:$0x1]
  %v1177 = vlaneseq
  %v1178 = vshrl.u32 %v1177, 7
  %v1179 = vsub.s32 0, %v1178
  %v1180 = vrot.slane %v1176, %v1179
  %v1182 = vsel %vm133, %v1170, 0
  %v1185 = vsel %vm133, %v1171, 0
  %1187 = vmatprep.subr.mxu0 0.0
  %1188 = vmatpush1.msra.mxu0 %v1172
  %1189 = vmatprep.subr.mxu0 0.0
  %1190 = vmatpush1.msra.mxu0 %v1173
  %1191 = vmatprep.subr.mxu0 0.0
  %1192 = vmatpush1.msra.mxu0 %v1174
  %1193 = vmatprep.subr.mxu0 0.0
  %1194 = vmatpush1.msra.mxu0 %v1175
  %1195 = vmatprep.subr.mxu0 0.0
  %1196 = vmatpush1.msra.mxu0 0.0
  %1197 = vmatprep.subr.mxu0 0.0
  %1198 = vmatpush1.msra.mxu0 0.0
  %1199 = vmatprep.subr.mxu0 0.0
  %1200 = vmatpush1.msra.mxu0 0.0
  %1201 = vmatprep.subr.mxu0 0.0
  %1202 = vmatpush1.msra.mxu0 0.0
  %1203 = vmatprep.subr.mxu0 0.0
  %1204 = vmatpush1.msra.mxu0 0.0
  %1205 = vmatprep.subr.mxu0 0.0
  %1206 = vmatpush1.msra.mxu0 0.0
  %1207 = vmatprep.subr.mxu0 0.0
  %1208 = vmatpush1.msra.mxu0 0.0
  %1209 = vmatprep.subr.mxu0 0.0
  %1210 = vmatpush1.msra.mxu0 0.0
  %1211 = vmatprep.subr.mxu0 0.0
  %1212 = vmatpush1.msra.mxu0 0.0
  %1213 = vmatprep.subr.mxu0 0.0
  %1214 = vmatpush1.msra.mxu0 0.0
  %1215 = vmatprep.subr.mxu0 0.0
  %1216 = vmatpush1.msra.mxu0 0.0
  %1217 = vmatprep.subr.mxu0 0.0
  %1218 = vmatpush1.msra.mxu0 0.0
  %1219 = vmatprep.subr.mxu0 0.0
  %1220 = vmatpush1.msra.mxu0 0.0
  %1221 = vmatprep.subr.mxu0 0.0
  %1222 = vmatpush1.msra.mxu0 0.0
  %1223 = vmatprep.subr.mxu0 0.0
  %1224 = vmatpush1.msra.mxu0 0.0
  %1225 = vmatprep.subr.mxu0 0.0
  %1226 = vmatpush1.msra.mxu0 0.0
  %1227 = vmatprep.subr.mxu0 0.0
  %1228 = vmatpush1.msra.mxu0 0.0
  %1229 = vmatprep.subr.mxu0 0.0
  %1230 = vmatpush1.msra.mxu0 0.0
  %1231 = vmatprep.subr.mxu0 0.0
  %1232 = vmatpush1.msra.mxu0 0.0
  %1233 = vmatprep.subr.mxu0 0.0
  %1234 = vmatpush1.msra.mxu0 0.0
  %1235 = vmatprep.subr.mxu0 0.0
  %1236 = vmatpush1.msra.mxu0 0.0
  %1237 = vmatprep.subr.mxu0 0.0
  %1238 = vmatpush1.msra.mxu0 0.0
  %1239 = vmatprep.subr.mxu0 0.0
  %1240 = vmatpush1.msra.mxu0 0.0
  %1241 = vmatprep.subr.mxu0 0.0
  %1242 = vmatpush1.msra.mxu0 0.0
  %1243 = vmatprep.subr.mxu0 0.0
  %1244 = vmatpush1.msra.mxu0 0.0
  %1245 = vmatprep.subr.mxu0 0.0
  %1246 = vmatpush1.msra.mxu0 0.0
  %1247 = vmatprep.subr.mxu0 0.0
  %1248 = vmatpush1.msra.mxu0 0.0
  %1249 = vmatprep.subr.mxu0 0.0
  %1250 = vmatpush1.msra.mxu0 0.0
  %1251 = vmatprep.mubr.f32.mxu0 0.0
  %1252 = vmatmul.mubr.f32.gmra.mrb[0].mxu0 %v1182
  %v1253 = vpop.f32.mrb[0].mxu0
  %v1254 = vadd.f32 %v1180, %v1253
  %v1255 = vpop.f32.mrb[0].mxu0
  %1256 = vmatprep.mubr.f32.mxu0 0.0
  %1257 = vmatmul.mubr.f32.gmra.mrb[0].mxu0 %v1185
  %v1258 = vpop.f32.mrb[0].mxu0
  %v1259 = vadd.f32 %v1180, %v1258
  %v1260 = vpop.f32.mrb[0].mxu0
  %1261 = vdwg.mxu0
  %1264 = vrot.lane.b32.xlu0 %v1254, 96
  %v1265 = vpop.permute.xlu0 %1264
  %1266 = vrot.lane.b32.xlu0 %v1259, 96
  %v1267 = vpop.permute.xlu0 %1266
  %v1268 = vsel %vm312, %v1254, 0
  %v1270 = vsel %vm312, %v1259, 0
  %v1272 = vsel %vm312, %v1265, 0
  %v1274 = vsel %vm312, %v1267, 0
  %1276 = vmatprep.subr.mxu0 0.0
  %1277 = vmatpush1.xpose.msra.mxu0 %v1272
  %1278 = vmatprep.subr.mxu0 0.0
  %1279 = vmatpush1.xpose.msra.mxu0 %v1274
  %1280 = vmatprep.subr.mxu0 0.0
  %1281 = vmatpush1.xpose.msra.mxu0 0.0
  %1282 = vmatprep.subr.mxu0 0.0
  %1283 = vmatpush1.xpose.msra.mxu0 0.0
  %1284 = vmatprep.subr.mxu0 0.0
  %1285 = vmatpush1.xpose.msra.mxu0 0.0
  %1286 = vmatprep.subr.mxu0 0.0
  %1287 = vmatpush1.xpose.msra.mxu0 0.0
  %1288 = vmatprep.subr.mxu0 0.0
  %1289 = vmatpush1.xpose.msra.mxu0 0.0
  %1290 = vmatprep.subr.mxu0 0.0
  %1291 = vmatpush1.xpose.msra.mxu0 0.0
  %1292 = vmatprep.subr.mxu0 0.0
  %1293 = vmatpush1.xpose.msra.mxu0 0.0
  %1294 = vmatprep.subr.mxu0 0.0
  %1295 = vmatpush1.xpose.msra.mxu0 0.0
  %1296 = vmatprep.subr.mxu0 0.0
  %1297 = vmatpush1.xpose.msra.mxu0 0.0
  %1298 = vmatprep.subr.mxu0 0.0
  %1299 = vmatpush1.xpose.msra.mxu0 0.0
  %1300 = vmatprep.subr.mxu0 0.0
  %1301 = vmatpush1.xpose.msra.mxu0 0.0
  %1302 = vmatprep.subr.mxu0 0.0
  %1303 = vmatpush1.xpose.msra.mxu0 0.0
  %1304 = vmatprep.subr.mxu0 0.0
  %1305 = vmatpush1.xpose.msra.mxu0 0.0
  %1306 = vmatprep.subr.mxu0 0.0
  %1307 = vmatpush1.xpose.msra.mxu0 0.0
  %1308 = vmatprep.subr.mxu0 0.0
  %1309 = vmatpush1.xpose.msra.mxu0 0.0
  %1310 = vmatprep.subr.mxu0 0.0
  %1311 = vmatpush1.xpose.msra.mxu0 0.0
  %1312 = vmatprep.subr.mxu0 0.0
  %1313 = vmatpush1.xpose.msra.mxu0 0.0
  %1314 = vmatprep.subr.mxu0 0.0
  %1315 = vmatpush1.xpose.msra.mxu0 0.0
  %1316 = vmatprep.subr.mxu0 0.0
  %1317 = vmatpush1.xpose.msra.mxu0 0.0
  %1318 = vmatprep.subr.mxu0 0.0
  %1319 = vmatpush1.xpose.msra.mxu0 0.0
  %1320 = vmatprep.subr.mxu0 0.0
  %1321 = vmatpush1.xpose.msra.mxu0 0.0
  %1322 = vmatprep.subr.mxu0 0.0
  %1323 = vmatpush1.xpose.msra.mxu0 0.0
  %1324 = vmatprep.subr.mxu0 0.0
  %1325 = vmatpush1.xpose.msra.mxu0 0.0
  %1326 = vmatprep.subr.mxu0 0.0
  %1327 = vmatpush1.xpose.msra.mxu0 0.0
  %1328 = vmatprep.subr.mxu0 0.0
  %1329 = vmatpush1.xpose.msra.mxu0 0.0
  %1330 = vmatprep.subr.mxu0 0.0
  %1331 = vmatpush1.xpose.msra.mxu0 0.0
  %1332 = vmatprep.subr.mxu0 0.0
  %1333 = vmatpush1.xpose.msra.mxu0 0.0
  %1334 = vmatprep.subr.mxu0 0.0
  %1335 = vmatpush1.xpose.msra.mxu0 0.0
  %1336 = vmatprep.subr.mxu0 0.0
  %1337 = vmatpush1.xpose.msra.mxu0 0.0
  %1338 = vmatprep.subr.mxu0 0.0
  %1339 = vmatpush1.xpose.msra.mxu0 0.0
  %1340 = vmatprep.mubr.f32.mxu0 0.0
  %1341 = vmatmul.mubr.f32.gmra.mrb[0].mxu0 %v1268
  %v1342 = vpop.f32.mrb[0].mxu0
  %v1343 = vadd.f32 0.0, %v1342
  %v1344 = vpop.f32.mrb[0].mxu0
  %1345 = vmatprep.mubr.f32.mxu0 0.0
  %1346 = vmatmul.mubr.f32.gmra.mrb[0].mxu0 %v1270
  %v1347 = vpop.f32.mrb[0].mxu0
  %v1348 = vadd.f32 0.0, %v1347
  %v1349 = vpop.f32.mrb[0].mxu0
  %1350 = vdwg.mxu0
  %v1351 = vmul.f32 %v1343, 0.25
  %v1352 = vmul.f32 %v1348, 0.25
  %v1353 = vadd.f32 %v1351, %v214
  %v1354 = vadd.f32 %v1352, %v215
  %v1355 = vsel %vm312, %v1353, -inf
  %1356 = vmax.xlane.f32.xlu0 %v1355
  %v1357 = vpop.xlane.xlu0 %1356
  %v1358 = vsel %vm312, %v1354, -inf
  %1359 = vmax.xlane.f32.xlu0 %v1358
  %v1360 = vpop.xlane.xlu0 %1359
  %v1361 = vsub.f32 %v1353, %v1357
  %v1362 = vsub.f32 %v1354, %v1360
  %v1363 = vmul.f32 %v1361, 1.442695
  %v1364 = vpow.pop %v1363
  %v1365 = vmul.f32 %v1362, 1.442695
  %v1366 = vpow.pop %v1365
  %v1367 = vsel %vm312, %v1364, 0.0
  %1368 = vadd.xlane.f32.xlu0 %v1367
  %v1369 = vpop.xlane.xlu0 %1368
  %v1370 = vsel %vm312, %v1366, 0.0
  %1371 = vadd.xlane.f32.xlu0 %v1370
  %v1372 = vpop.xlane.xlu0 %1371
  %v1373 = vrcp.pop %v1369
  %v1374 = vmul.f32 %v1364, %v1373
  %v1375 = vrcp.pop %v1372
  %v1376 = vmul.f32 %v1366, %v1375
  %1377 = vrot.lane.b32.xlu0 %v1254, 64
  %v1378 = vpop.permute.xlu0 %1377
  %1379 = vrot.lane.b32.xlu0 %v1259, 64
  %v1380 = vpop.permute.xlu0 %1379
  %v1384 = vsel %vm312, %v1374, 0
  %v1387 = vsel %vm312, %v1376, 0
  %1389 = vmatprep.subr.mxu0 0.0
  %1390 = vmatpush1.msra.mxu0 %v1378
  %1391 = vmatprep.subr.mxu0 0.0
  %1392 = vmatpush1.msra.mxu0 %v1380
  %1393 = vmatprep.subr.mxu0 0.0
  %1394 = vmatpush1.msra.mxu0 0.0
  %1395 = vmatprep.subr.mxu0 0.0
  %1396 = vmatpush1.msra.mxu0 0.0
  %1397 = vmatprep.subr.mxu0 0.0
  %1398 = vmatpush1.msra.mxu0 0.0
  %1399 = vmatprep.subr.mxu0 0.0
  %1400 = vmatpush1.msra.mxu0 0.0
  %1401 = vmatprep.subr.mxu0 0.0
  %1402 = vmatpush1.msra.mxu0 0.0
  %1403 = vmatprep.subr.mxu0 0.0
  %1404 = vmatpush1.msra.mxu0 0.0
  %1405 = vmatprep.subr.mxu0 0.0
  %1406 = vmatpush1.msra.mxu0 0.0
  %1407 = vmatprep.subr.mxu0 0.0
  %1408 = vmatpush1.msra.mxu0 0.0
  %1409 = vmatprep.subr.mxu0 0.0
  %1410 = vmatpush1.msra.mxu0 0.0
  %1411 = vmatprep.subr.mxu0 0.0
  %1412 = vmatpush1.msra.mxu0 0.0
  %1413 = vmatprep.subr.mxu0 0.0
  %1414 = vmatpush1.msra.mxu0 0.0
  %1415 = vmatprep.subr.mxu0 0.0
  %1416 = vmatpush1.msra.mxu0 0.0
  %1417 = vmatprep.subr.mxu0 0.0
  %1418 = vmatpush1.msra.mxu0 0.0
  %1419 = vmatprep.subr.mxu0 0.0
  %1420 = vmatpush1.msra.mxu0 0.0
  %1421 = vmatprep.subr.mxu0 0.0
  %1422 = vmatpush1.msra.mxu0 0.0
  %1423 = vmatprep.subr.mxu0 0.0
  %1424 = vmatpush1.msra.mxu0 0.0
  %1425 = vmatprep.subr.mxu0 0.0
  %1426 = vmatpush1.msra.mxu0 0.0
  %1427 = vmatprep.subr.mxu0 0.0
  %1428 = vmatpush1.msra.mxu0 0.0
  %1429 = vmatprep.subr.mxu0 0.0
  %1430 = vmatpush1.msra.mxu0 0.0
  %1431 = vmatprep.subr.mxu0 0.0
  %1432 = vmatpush1.msra.mxu0 0.0
  %1433 = vmatprep.subr.mxu0 0.0
  %1434 = vmatpush1.msra.mxu0 0.0
  %1435 = vmatprep.subr.mxu0 0.0
  %1436 = vmatpush1.msra.mxu0 0.0
  %1437 = vmatprep.subr.mxu0 0.0
  %1438 = vmatpush1.msra.mxu0 0.0
  %1439 = vmatprep.subr.mxu0 0.0
  %1440 = vmatpush1.msra.mxu0 0.0
  %1441 = vmatprep.subr.mxu0 0.0
  %1442 = vmatpush1.msra.mxu0 0.0
  %1443 = vmatprep.subr.mxu0 0.0
  %1444 = vmatpush1.msra.mxu0 0.0
  %1445 = vmatprep.subr.mxu0 0.0
  %1446 = vmatpush1.msra.mxu0 0.0
  %1447 = vmatprep.subr.mxu0 0.0
  %1448 = vmatpush1.msra.mxu0 0.0
  %1449 = vmatprep.subr.mxu0 0.0
  %1450 = vmatpush1.msra.mxu0 0.0
  %1451 = vmatprep.subr.mxu0 0.0
  %1452 = vmatpush1.msra.mxu0 0.0
  %1453 = vmatprep.mubr.f32.mxu0 0.0
  %1454 = vmatmul.mubr.f32.gmra.mrb[0].mxu0 %v1384
  %v1455 = vpop.f32.mrb[0].mxu0
  %v1456 = vadd.f32 0.0, %v1455
  %v1457 = vpop.f32.mrb[0].mxu0
  %1458 = vmatprep.mubr.f32.mxu0 0.0
  %1459 = vmatmul.mubr.f32.gmra.mrb[0].mxu0 %v1387
  %v1460 = vpop.f32.mrb[0].mxu0
  %v1461 = vadd.f32 0.0, %v1460
  %v1462 = vpop.f32.mrb[0].mxu0
  %1463 = vdwg.mxu0
  %v1464 = vld [vmem:[%s2 + $0x68] sm:$0xff]
  %v1465 = vld [vmem:[%s2 + $0x70] sm:$0xff]
  %1466 = vrot.lane.b32.xlu0 %v1254, 112
  %v1467 = vpop.permute.xlu0 %1466
  %1468 = vrot.lane.b32.xlu0 %v1259, 112
  %v1469 = vpop.permute.xlu0 %1468
  %1470 = vrot.lane.b32.xlu0 %v1254, 80
  %v1471 = vpop.permute.xlu0 %1470
  %1472 = vrot.lane.b32.xlu0 %v1259, 80
  %v1473 = vpop.permute.xlu0 %1472
  %v1474 = vsel %vm312, %v1467, 0
  %v1476 = vsel %vm312, %v1469, 0
  %v1478 = vsel %vm312, %v1471, 0
  %v1480 = vsel %vm312, %v1473, 0
  %1482 = vmatprep.subr.mxu0 0.0
  %1483 = vmatpush1.xpose.msra.mxu0 %v1478
  %1484 = vmatprep.subr.mxu0 0.0
  %1485 = vmatpush1.xpose.msra.mxu0 %v1480
  %1486 = vmatprep.subr.mxu0 0.0
  %1487 = vmatpush1.xpose.msra.mxu0 0.0
  %1488 = vmatprep.subr.mxu0 0.0
  %1489 = vmatpush1.xpose.msra.mxu0 0.0
  %1490 = vmatprep.subr.mxu0 0.0
  %1491 = vmatpush1.xpose.msra.mxu0 0.0
  %1492 = vmatprep.subr.mxu0 0.0
  %1493 = vmatpush1.xpose.msra.mxu0 0.0
  %1494 = vmatprep.subr.mxu0 0.0
  %1495 = vmatpush1.xpose.msra.mxu0 0.0
  %1496 = vmatprep.subr.mxu0 0.0
  %1497 = vmatpush1.xpose.msra.mxu0 0.0
  %1498 = vmatprep.subr.mxu0 0.0
  %1499 = vmatpush1.xpose.msra.mxu0 0.0
  %1500 = vmatprep.subr.mxu0 0.0
  %1501 = vmatpush1.xpose.msra.mxu0 0.0
  %1502 = vmatprep.subr.mxu0 0.0
  %1503 = vmatpush1.xpose.msra.mxu0 0.0
  %1504 = vmatprep.subr.mxu0 0.0
  %1505 = vmatpush1.xpose.msra.mxu0 0.0
  %1506 = vmatprep.subr.mxu0 0.0
  %1507 = vmatpush1.xpose.msra.mxu0 0.0
  %1508 = vmatprep.subr.mxu0 0.0
  %1509 = vmatpush1.xpose.msra.mxu0 0.0
  %1510 = vmatprep.subr.mxu0 0.0
  %1511 = vmatpush1.xpose.msra.mxu0 0.0
  %1512 = vmatprep.subr.mxu0 0.0
  %1513 = vmatpush1.xpose.msra.mxu0 0.0
  %1514 = vmatprep.subr.mxu0 0.0
  %1515 = vmatpush1.xpose.msra.mxu0 0.0
  %1516 = vmatprep.subr.mxu0 0.0
  %1517 = vmatpush1.xpose.msra.mxu0 0.0
  %1518 = vmatprep.subr.mxu0 0.0
  %1519 = vmatpush1.xpose.msra.mxu0 0.0
  %1520 = vmatprep.subr.mxu0 0.0
  %1521 = vmatpush1.xpose.msra.mxu0 0.0
  %1522 = vmatprep.subr.mxu0 0.0
  %1523 = vmatpush1.xpose.msra.mxu0 0.0
  %1524 = vmatprep.subr.mxu0 0.0
  %1525 = vmatpush1.xpose.msra.mxu0 0.0
  %1526 = vmatprep.subr.mxu0 0.0
  %1527 = vmatpush1.xpose.msra.mxu0 0.0
  %1528 = vmatprep.subr.mxu0 0.0
  %1529 = vmatpush1.xpose.msra.mxu0 0.0
  %1530 = vmatprep.subr.mxu0 0.0
  %1531 = vmatpush1.xpose.msra.mxu0 0.0
  %1532 = vmatprep.subr.mxu0 0.0
  %1533 = vmatpush1.xpose.msra.mxu0 0.0
  %1534 = vmatprep.subr.mxu0 0.0
  %1535 = vmatpush1.xpose.msra.mxu0 0.0
  %1536 = vmatprep.subr.mxu0 0.0
  %1537 = vmatpush1.xpose.msra.mxu0 0.0
  %1538 = vmatprep.subr.mxu0 0.0
  %1539 = vmatpush1.xpose.msra.mxu0 0.0
  %1540 = vmatprep.subr.mxu0 0.0
  %1541 = vmatpush1.xpose.msra.mxu0 0.0
  %1542 = vmatprep.subr.mxu0 0.0
  %1543 = vmatpush1.xpose.msra.mxu0 0.0
  %1544 = vmatprep.subr.mxu0 0.0
  %1545 = vmatpush1.xpose.msra.mxu0 0.0
  %1546 = vmatprep.mubr.f32.mxu0 0.0
  %1547 = vmatmul.mubr.f32.gmra.mrb[0].mxu0 %v1474
  %v1548 = vpop.f32.mrb[0].mxu0
  %v1549 = vadd.f32 0.0, %v1548
  %v1550 = vpop.f32.mrb[0].mxu0
  %1551 = vmatprep.mubr.f32.mxu0 0.0
  %1552 = vmatmul.mubr.f32.gmra.mrb[0].mxu0 %v1476
  %v1553 = vpop.f32.mrb[0].mxu0
  %v1554 = vadd.f32 0.0, %v1553
  %v1555 = vpop.f32.mrb[0].mxu0
  %1556 = vdwg.mxu0
  %v1557 = vmul.f32 %v1549, 0.25
  %v1558 = vmul.f32 %v1554, 0.25
  %v1559 = vadd.f32 %v1557, %v214
  %v1560 = vadd.f32 %v1558, %v215
  %v1561 = vsel %vm312, %v1559, -inf
  %1562 = vmax.xlane.f32.xlu0 %v1561
  %v1563 = vpop.xlane.xlu0 %1562
  %v1564 = vsel %vm312, %v1560, -inf
  %1565 = vmax.xlane.f32.xlu0 %v1564
  %v1566 = vpop.xlane.xlu0 %1565
  %v1567 = vsub.f32 %v1559, %v1563
  %v1568 = vsub.f32 %v1560, %v1566
  %v1569 = vmul.f32 %v1567, 1.442695
  %v1570 = vpow.pop %v1569
  %v1571 = vmul.f32 %v1568, 1.442695
  %v1572 = vpow.pop %v1571
  %v1573 = vsel %vm312, %v1570, 0.0
  %1574 = vadd.xlane.f32.xlu0 %v1573
  %v1575 = vpop.xlane.xlu0 %1574
  %v1576 = vsel %vm312, %v1572, 0.0
  %1577 = vadd.xlane.f32.xlu0 %v1576
  %v1578 = vpop.xlane.xlu0 %1577
  %v1579 = vrcp.pop %v1575
  %v1580 = vmul.f32 %v1570, %v1579
  %v1581 = vrcp.pop %v1578
  %v1582 = vmul.f32 %v1572, %v1581
  %1583 = vrot.lane.b32.xlu0 %v1254, 48
  %v1584 = vpop.permute.xlu0 %1583
  %1585 = vrot.lane.b32.xlu0 %v1259, 48
  %v1586 = vpop.permute.xlu0 %1585
  %v1590 = vsel %vm312, %v1580, 0
  %v1593 = vsel %vm312, %v1582, 0
  %1595 = vmatprep.subr.mxu0 0.0
  %1596 = vmatpush1.msra.mxu0 %v1584
  %1597 = vmatprep.subr.mxu0 0.0
  %1598 = vmatpush1.msra.mxu0 %v1586
  %1599 = vmatprep.subr.mxu0 0.0
  %1600 = vmatpush1.msra.mxu0 0.0
  %1601 = vmatprep.subr.mxu0 0.0
  %1602 = vmatpush1.msra.mxu0 0.0
  %1603 = vmatprep.subr.mxu0 0.0
  %1604 = vmatpush1.msra.mxu0 0.0
  %1605 = vmatprep.subr.mxu0 0.0
  %1606 = vmatpush1.msra.mxu0 0.0
  %1607 = vmatprep.subr.mxu0 0.0
  %1608 = vmatpush1.msra.mxu0 0.0
  %1609 = vmatprep.subr.mxu0 0.0
  %1610 = vmatpush1.msra.mxu0 0.0
  %1611 = vmatprep.subr.mxu0 0.0
  %1612 = vmatpush1.msra.mxu0 0.0
  %1613 = vmatprep.subr.mxu0 0.0
  %1614 = vmatpush1.msra.mxu0 0.0
  %1615 = vmatprep.subr.mxu0 0.0
  %1616 = vmatpush1.msra.mxu0 0.0
  %1617 = vmatprep.subr.mxu0 0.0
  %1618 = vmatpush1.msra.mxu0 0.0
  %1619 = vmatprep.subr.mxu0 0.0
  %1620 = vmatpush1.msra.mxu0 0.0
  %1621 = vmatprep.subr.mxu0 0.0
  %1622 = vmatpush1.msra.mxu0 0.0
  %1623 = vmatprep.subr.mxu0 0.0
  %1624 = vmatpush1.msra.mxu0 0.0
  %1625 = vmatprep.subr.mxu0 0.0
  %1626 = vmatpush1.msra.mxu0 0.0
  %1627 = vmatprep.subr.mxu0 0.0
  %1628 = vmatpush1.msra.mxu0 0.0
  %1629 = vmatprep.subr.mxu0 0.0
  %1630 = vmatpush1.msra.mxu0 0.0
  %1631 = vmatprep.subr.mxu0 0.0
  %1632 = vmatpush1.msra.mxu0 0.0
  %1633 = vmatprep.subr.mxu0 0.0
  %1634 = vmatpush1.msra.mxu0 0.0
  %1635 = vmatprep.subr.mxu0 0.0
  %1636 = vmatpush1.msra.mxu0 0.0
  %1637 = vmatprep.subr.mxu0 0.0
  %1638 = vmatpush1.msra.mxu0 0.0
  %1639 = vmatprep.subr.mxu0 0.0
  %1640 = vmatpush1.msra.mxu0 0.0
  %1641 = vmatprep.subr.mxu0 0.0
  %1642 = vmatpush1.msra.mxu0 0.0
  %1643 = vmatprep.subr.mxu0 0.0
  %1644 = vmatpush1.msra.mxu0 0.0
  %1645 = vmatprep.subr.mxu0 0.0
  %1646 = vmatpush1.msra.mxu0 0.0
  %1647 = vmatprep.subr.mxu0 0.0
  %1648 = vmatpush1.msra.mxu0 0.0
  %1649 = vmatprep.subr.mxu0 0.0
  %1650 = vmatpush1.msra.mxu0 0.0
  %1651 = vmatprep.subr.mxu0 0.0
  %1652 = vmatpush1.msra.mxu0 0.0
  %1653 = vmatprep.subr.mxu0 0.0
  %1654 = vmatpush1.msra.mxu0 0.0
  %1655 = vmatprep.subr.mxu0 0.0
  %1656 = vmatpush1.msra.mxu0 0.0
  %1657 = vmatprep.subr.mxu0 0.0
  %1658 = vmatpush1.msra.mxu0 0.0
  %1659 = vmatprep.mubr.f32.mxu0 0.0
  %1660 = vmatmul.mubr.f32.gmra.mrb[0].mxu0 %v1590
  %v1661 = vpop.f32.mrb[0].mxu0
  %v1662 = vadd.f32 0.0, %v1661
  %v1663 = vpop.f32.mrb[0].mxu0
  %1664 = vmatprep.mubr.f32.mxu0 0.0
  %1665 = vmatmul.mubr.f32.gmra.mrb[0].mxu0 %v1593
  %v1666 = vpop.f32.mrb[0].mxu0
  %v1667 = vadd.f32 0.0, %v1666
  %v1668 = vpop.f32.mrb[0].mxu0
  %1669 = vdwg.mxu0
  %v1670 = vld [vmem:[%s2 + $0x78] sm:$0xff]
  %v1671 = vld [vmem:[%s2 + $0x80] sm:$0xff]
  %v1673 = vsel %vm312, %v1662, 0
  %v1676 = vsel %vm312, %v1667, 0
  %1678 = vmatprep.subr.mxu0 0.0
  %1679 = vmatpush1.msra.mxu0 %v1670
  %1680 = vmatprep.subr.mxu0 0.0
  %1681 = vmatpush1.msra.mxu0 %v1671
  %1682 = vmatprep.subr.mxu0 0.0
  %1683 = vmatpush1.msra.mxu0 0.0
  %1684 = vmatprep.subr.mxu0 0.0
  %1685 = vmatpush1.msra.mxu0 0.0
  %1686 = vmatprep.subr.mxu0 0.0
  %1687 = vmatpush1.msra.mxu0 0.0
  %1688 = vmatprep.subr.mxu0 0.0
  %1689 = vmatpush1.msra.mxu0 0.0
  %1690 = vmatprep.subr.mxu0 0.0
  %1691 = vmatpush1.msra.mxu0 0.0
  %1692 = vmatprep.subr.mxu0 0.0
  %1693 = vmatpush1.msra.mxu0 0.0
  %1694 = vmatprep.subr.mxu0 0.0
  %1695 = vmatpush1.msra.mxu0 0.0
  %1696 = vmatprep.subr.mxu0 0.0
  %1697 = vmatpush1.msra.mxu0 0.0
  %1698 = vmatprep.subr.mxu0 0.0
  %1699 = vmatpush1.msra.mxu0 0.0
  %1700 = vmatprep.subr.mxu0 0.0
  %1701 = vmatpush1.msra.mxu0 0.0
  %1702 = vmatprep.subr.mxu0 0.0
  %1703 = vmatpush1.msra.mxu0 0.0
  %1704 = vmatprep.subr.mxu0 0.0
  %1705 = vmatpush1.msra.mxu0 0.0
  %1706 = vmatprep.subr.mxu0 0.0
  %1707 = vmatpush1.msra.mxu0 0.0
  %1708 = vmatprep.subr.mxu0 0.0
  %1709 = vmatpush1.msra.mxu0 0.0
  %1710 = vmatprep.subr.mxu0 0.0
  %1711 = vmatpush1.msra.mxu0 0.0
  %1712 = vmatprep.subr.mxu0 0.0
  %1713 = vmatpush1.msra.mxu0 0.0
  %1714 = vmatprep.subr.mxu0 0.0
  %1715 = vmatpush1.msra.mxu0 0.0
  %1716 = vmatprep.subr.mxu0 0.0
  %1717 = vmatpush1.msra.mxu0 0.0
  %1718 = vmatprep.subr.mxu0 0.0
  %1719 = vmatpush1.msra.mxu0 0.0
  %1720 = vmatprep.subr.mxu0 0.0
  %1721 = vmatpush1.msra.mxu0 0.0
  %1722 = vmatprep.subr.mxu0 0.0
  %1723 = vmatpush1.msra.mxu0 0.0
  %1724 = vmatprep.subr.mxu0 0.0
  %1725 = vmatpush1.msra.mxu0 0.0
  %1726 = vmatprep.subr.mxu0 0.0
  %1727 = vmatpush1.msra.mxu0 0.0
  %1728 = vmatprep.subr.mxu0 0.0
  %1729 = vmatpush1.msra.mxu0 0.0
  %1730 = vmatprep.subr.mxu0 0.0
  %1731 = vmatpush1.msra.mxu0 0.0
  %1732 = vmatprep.subr.mxu0 0.0
  %1733 = vmatpush1.msra.mxu0 0.0
  %1734 = vmatprep.subr.mxu0 0.0
  %1735 = vmatpush1.msra.mxu0 0.0
  %1736 = vmatprep.subr.mxu0 0.0
  %1737 = vmatpush1.msra.mxu0 0.0
  %1738 = vmatprep.subr.mxu0 0.0
  %1739 = vmatpush1.msra.mxu0 0.0
  %1740 = vmatprep.subr.mxu0 0.0
  %1741 = vmatpush1.msra.mxu0 0.0
  %1742 = vmatprep.mubr.f32.mxu0 0.0
  %1743 = vmatmul.mubr.f32.gmra.mrb[0].mxu0 %v1673
  %v1744 = vpop.f32.mrb[0].mxu0
  %v1745 = vadd.f32 0.0, %v1744
  %v1746 = vpop.f32.mrb[0].mxu0
  %1747 = vmatprep.mubr.f32.mxu0 0.0
  %1748 = vmatmul.mubr.f32.gmra.mrb[0].mxu0 %v1676
  %v1749 = vpop.f32.mrb[0].mxu0
  %v1750 = vadd.f32 0.0, %v1749
  %v1751 = vpop.f32.mrb[0].mxu0
  %1752 = vdwg.mxu0
  %v1754 = vsel %vm312, %v1456, 0
  %v1757 = vsel %vm312, %v1461, 0
  %1759 = vmatprep.subr.mxu0 0.0
  %1760 = vmatpush1.msra.mxu0 %v1464
  %1761 = vmatprep.subr.mxu0 0.0
  %1762 = vmatpush1.msra.mxu0 %v1465
  %1763 = vmatprep.subr.mxu0 0.0
  %1764 = vmatpush1.msra.mxu0 0.0
  %1765 = vmatprep.subr.mxu0 0.0
  %1766 = vmatpush1.msra.mxu0 0.0
  %1767 = vmatprep.subr.mxu0 0.0
  %1768 = vmatpush1.msra.mxu0 0.0
  %1769 = vmatprep.subr.mxu0 0.0
  %1770 = vmatpush1.msra.mxu0 0.0
  %1771 = vmatprep.subr.mxu0 0.0
  %1772 = vmatpush1.msra.mxu0 0.0
  %1773 = vmatprep.subr.mxu0 0.0
  %1774 = vmatpush1.msra.mxu0 0.0
  %1775 = vmatprep.subr.mxu0 0.0
  %1776 = vmatpush1.msra.mxu0 0.0
  %1777 = vmatprep.subr.mxu0 0.0
  %1778 = vmatpush1.msra.mxu0 0.0
  %1779 = vmatprep.subr.mxu0 0.0
  %1780 = vmatpush1.msra.mxu0 0.0
  %1781 = vmatprep.subr.mxu0 0.0
  %1782 = vmatpush1.msra.mxu0 0.0
  %1783 = vmatprep.subr.mxu0 0.0
  %1784 = vmatpush1.msra.mxu0 0.0
  %1785 = vmatprep.subr.mxu0 0.0
  %1786 = vmatpush1.msra.mxu0 0.0
  %1787 = vmatprep.subr.mxu0 0.0
  %1788 = vmatpush1.msra.mxu0 0.0
  %1789 = vmatprep.subr.mxu0 0.0
  %1790 = vmatpush1.msra.mxu0 0.0
  %1791 = vmatprep.subr.mxu0 0.0
  %1792 = vmatpush1.msra.mxu0 0.0
  %1793 = vmatprep.subr.mxu0 0.0
  %1794 = vmatpush1.msra.mxu0 0.0
  %1795 = vmatprep.subr.mxu0 0.0
  %1796 = vmatpush1.msra.mxu0 0.0
  %1797 = vmatprep.subr.mxu0 0.0
  %1798 = vmatpush1.msra.mxu0 0.0
  %1799 = vmatprep.subr.mxu0 0.0
  %1800 = vmatpush1.msra.mxu0 0.0
  %1801 = vmatprep.subr.mxu0 0.0
  %1802 = vmatpush1.msra.mxu0 0.0
  %1803 = vmatprep.subr.mxu0 0.0
  %1804 = vmatpush1.msra.mxu0 0.0
  %1805 = vmatprep.subr.mxu0 0.0
  %1806 = vmatpush1.msra.mxu0 0.0
  %1807 = vmatprep.subr.mxu0 0.0
  %1808 = vmatpush1.msra.mxu0 0.0
  %1809 = vmatprep.subr.mxu0 0.0
  %1810 = vmatpush1.msra.mxu0 0.0
  %1811 = vmatprep.subr.mxu0 0.0
  %1812 = vmatpush1.msra.mxu0 0.0
  %1813 = vmatprep.subr.mxu0 0.0
  %1814 = vmatpush1.msra.mxu0 0.0
  %1815 = vmatprep.subr.mxu0 0.0
  %1816 = vmatpush1.msra.mxu0 0.0
  %1817 = vmatprep.subr.mxu0 0.0
  %1818 = vmatpush1.msra.mxu0 0.0
  %1819 = vmatprep.subr.mxu0 0.0
  %1820 = vmatpush1.msra.mxu0 0.0
  %1821 = vmatprep.subr.mxu0 0.0
  %1822 = vmatpush1.msra.mxu0 0.0
  %1823 = vmatprep.mubr.f32.mxu0 0.0
  %1824 = vmatmul.mubr.f32.gmra.mrb[0].mxu0 %v1754
  %v1825 = vpop.f32.mrb[0].mxu0
  %v1826 = vadd.f32 %v1745, %v1825
  %v1827 = vpop.f32.mrb[0].mxu0
  %1828 = vmatprep.mubr.f32.mxu0 0.0
  %1829 = vmatmul.mubr.f32.gmra.mrb[0].mxu0 %v1757
  %v1830 = vpop.f32.mrb[0].mxu0
  %v1831 = vadd.f32 %v1750, %v1830
  %v1832 = vpop.f32.mrb[0].mxu0
  %1833 = vdwg.mxu0
  %v1834 = vld [vmem:[%s6 + $0xb] sm:$0x1]
  %v1835 = vlaneseq
  %v1836 = vshrl.u32 %v1835, 7
  %v1837 = vsub.s32 0, %v1836
  %v1838 = vrot.slane %v1834, %v1837
  %v1839 = vadd.f32 %v1826, %v1838
  %v1840 = vadd.f32 %v1831, %v1838
  %v1841 = vadd.f32 %v1170, %v1839
  %v1842 = vadd.f32 %v1171, %v1840
  %v1843 = vsel %vm133, %v1841, 0.0
  %1844 = vadd.xlane.f32.xlu0 %v1843
  %v1845 = vpop.xlane.xlu0 %1844
  %v1846 = vsel %vm133, %v1842, 0.0
  %1847 = vadd.xlane.f32.xlu0 %v1846
  %v1848 = vpop.xlane.xlu0 %1847
  %v1849 = vmul.f32 %v1845, %v140
  %v1850 = vmul.f32 %v1848, %v140
  %v1851 = vsub.f32 %v1841, %v1849
  %v1852 = vsub.f32 %v1842, %v1850
  %v1853 = vmul.f32 %v1851, %v1851
  %v1854 = vmul.f32 %v1852, %v1852
  %v1855 = vsel %vm133, %v1853, 0.0
  %1856 = vadd.xlane.f32.xlu0 %v1855
  %v1857 = vpop.xlane.xlu0 %1856
  %v1858 = vsel %vm133, %v1854, 0.0
  %1859 = vadd.xlane.f32.xlu0 %v1858
  %v1860 = vpop.xlane.xlu0 %1859
  %v1861 = vmul.f32 %v1857, %v140
  %v1862 = vmul.f32 %v1860, %v140
  %v1863 = vadd.f32 %v1861, 1e-12
  %v1864 = vadd.f32 %v1862, 1e-12
  %v1865 = vrsqrt.pop %v1863
  %v1866 = vrsqrt.pop %v1864
  %v1867 = vmul.f32 %v1851, %v1865
  %v1868 = vmul.f32 %v1852, %v1866
  %v1869 = vld [vmem:[%s6 + $0xc] sm:$0x1]
  %v1870 = vlaneseq
  %v1871 = vshrl.u32 %v1870, 7
  %v1872 = vsub.s32 0, %v1871
  %v1873 = vrot.slane %v1869, %v1872
  %v1874 = vmul.f32 %v1867, %v1873
  %v1875 = vmul.f32 %v1868, %v1873
  %v1876 = vld [vmem:[%s6 + $0xd] sm:$0x1]
  %v1877 = vlaneseq
  %v1878 = vshrl.u32 %v1877, 7
  %v1879 = vsub.s32 0, %v1878
  %v1880 = vrot.slane %v1876, %v1879
  %v1881 = vadd.f32 %v1874, %v1880
  %v1882 = vadd.f32 %v1875, %v1880
  %v1883 = vld [vmem:[%s4 + $0x20] sm:$0xff]
  %v1884 = vld [vmem:[%s4 + $0x28] sm:$0xff]
  %v1885 = vld [vmem:[%s4 + $0x30] sm:$0xff]
  %v1886 = vld [vmem:[%s4 + $0x38] sm:$0xff]
  %v1887 = vld [vmem:[%s6 + $0xe] sm:$0x1]
  %v1888 = vlaneseq
  %v1889 = vshrl.u32 %v1888, 7
  %v1890 = vsub.s32 0, %v1889
  %v1891 = vrot.slane %v1887, %v1890
  %v1893 = vsel %vm133, %v1881, 0
  %v1896 = vsel %vm133, %v1882, 0
  %1898 = vmatprep.subr.mxu0 0.0
  %1899 = vmatpush1.msra.mxu0 %v1883
  %1900 = vmatprep.subr.mxu0 0.0
  %1901 = vmatpush1.msra.mxu0 %v1884
  %1902 = vmatprep.subr.mxu0 0.0
  %1903 = vmatpush1.msra.mxu0 %v1885
  %1904 = vmatprep.subr.mxu0 0.0
  %1905 = vmatpush1.msra.mxu0 %v1886
  %1906 = vmatprep.subr.mxu0 0.0
  %1907 = vmatpush1.msra.mxu0 0.0
  %1908 = vmatprep.subr.mxu0 0.0
  %1909 = vmatpush1.msra.mxu0 0.0
  %1910 = vmatprep.subr.mxu0 0.0
  %1911 = vmatpush1.msra.mxu0 0.0
  %1912 = vmatprep.subr.mxu0 0.0
  %1913 = vmatpush1.msra.mxu0 0.0
  %1914 = vmatprep.subr.mxu0 0.0
  %1915 = vmatpush1.msra.mxu0 0.0
  %1916 = vmatprep.subr.mxu0 0.0
  %1917 = vmatpush1.msra.mxu0 0.0
  %1918 = vmatprep.subr.mxu0 0.0
  %1919 = vmatpush1.msra.mxu0 0.0
  %1920 = vmatprep.subr.mxu0 0.0
  %1921 = vmatpush1.msra.mxu0 0.0
  %1922 = vmatprep.subr.mxu0 0.0
  %1923 = vmatpush1.msra.mxu0 0.0
  %1924 = vmatprep.subr.mxu0 0.0
  %1925 = vmatpush1.msra.mxu0 0.0
  %1926 = vmatprep.subr.mxu0 0.0
  %1927 = vmatpush1.msra.mxu0 0.0
  %1928 = vmatprep.subr.mxu0 0.0
  %1929 = vmatpush1.msra.mxu0 0.0
  %1930 = vmatprep.subr.mxu0 0.0
  %1931 = vmatpush1.msra.mxu0 0.0
  %1932 = vmatprep.subr.mxu0 0.0
  %1933 = vmatpush1.msra.mxu0 0.0
  %1934 = vmatprep.subr.mxu0 0.0
  %1935 = vmatpush1.msra.mxu0 0.0
  %1936 = vmatprep.subr.mxu0 0.0
  %1937 = vmatpush1.msra.mxu0 0.0
  %1938 = vmatprep.subr.mxu0 0.0
  %1939 = vmatpush1.msra.mxu0 0.0
  %1940 = vmatprep.subr.mxu0 0.0
  %1941 = vmatpush1.msra.mxu0 0.0
  %1942 = vmatprep.subr.mxu0 0.0
  %1943 = vmatpush1.msra.mxu0 0.0
  %1944 = vmatprep.subr.mxu0 0.0
  %1945 = vmatpush1.msra.mxu0 0.0
  %1946 = vmatprep.subr.mxu0 0.0
  %1947 = vmatpush1.msra.mxu0 0.0
  %1948 = vmatprep.subr.mxu0 0.0
  %1949 = vmatpush1.msra.mxu0 0.0
  %1950 = vmatprep.subr.mxu0 0.0
  %1951 = vmatpush1.msra.mxu0 0.0
  %1952 = vmatprep.subr.mxu0 0.0
  %1953 = vmatpush1.msra.mxu0 0.0
  %1954 = vmatprep.subr.mxu0 0.0
  %1955 = vmatpush1.msra.mxu0 0.0
  %1956 = vmatprep.subr.mxu0 0.0
  %1957 = vmatpush1.msra.mxu0 0.0
  %1958 = vmatprep.subr.mxu0 0.0
  %1959 = vmatpush1.msra.mxu0 0.0
  %1960 = vmatprep.subr.mxu0 0.0
  %1961 = vmatpush1.msra.mxu0 0.0
  %1962 = vmatprep.mubr.f32.mxu0 0.0
  %1963 = vmatmul.mubr.f32.gmra.mrb[0].mxu0 %v1893
  %v1964 = vpop.f32.mrb[0].mxu0
  %v1965 = vadd.f32 %v1891, %v1964
  %v1966 = vpop.f32.mrb[0].mxu0
  %1967 = vmatprep.mubr.f32.mxu0 0.0
  %1968 = vmatmul.mubr.f32.gmra.mrb[0].mxu0 %v1896
  %v1969 = vpop.f32.mrb[0].mxu0
  %v1970 = vadd.f32 %v1891, %v1969
  %v1971 = vpop.f32.mrb[0].mxu0
  %1972 = vdwg.mxu0
  %v1973 = vmul.f32 %v1965, 0.5
  %v1974 = vmul.f32 %v1970, 0.5
  %v1975 = vmul.f32 %v1965, 0.044715
  %v1976 = vmul.f32 %v1970, 0.044715
  %v1977 = vmul.f32 %v1975, %v1965
  %v1978 = vmul.f32 %v1976, %v1970
  %v1979 = vmul.f32 %v1977, %v1965
  %v1980 = vmul.f32 %v1978, %v1970
  %v1981 = vadd.f32 %v1965, %v1979
  %v1982 = vadd.f32 %v1970, %v1980
  %v1983 = vmul.f32 %v1981, 0.7978846
  %v1984 = vmul.f32 %v1982, 0.7978846
  %v1985 = vtanh.pop %v1983
  %v1986 = vtanh.pop %v1984
  %v1987 = vadd.f32 %v1985, 1.0
  %v1988 = vadd.f32 %v1986, 1.0
  %v1989 = vmul.f32 %v1973, %v1987
  %v1990 = vmul.f32 %v1974, %v1988
  %v1991 = vld [vmem:[%s2 + $0xc8] sm:$0xff]
  %v1992 = vld [vmem:[%s2 + $0xd0] sm:$0xff]
  %v1993 = vld [vmem:[%s2 + $0xd8] sm:$0xff]
  %v1994 = vld [vmem:[%s2 + $0xe0] sm:$0xff]
  %v1995 = vld [vmem:[%s2 + $0xe8] sm:$0xff]
  %v1996 = vld [vmem:[%s2 + $0xf0] sm:$0xff]
  %v1997 = vld [vmem:[%s2 + $0xf8] sm:$0xff]
  %v1998 = vld [vmem:[%s2 + $0x100] sm:$0xff]
  %v1999 = vld [vmem:[%s6 + $0xf] sm:$0x1]
  %v2000 = vlaneseq
  %v2001 = vshrl.u32 %v2000, 7
  %v2002 = vsub.s32 0, %v2001
  %v2003 = vrot.slane %v1999, %v2002
  %v2005 = vsel %vm51, %v1989, 0
  %v2008 = vsel %vm51, %v1990, 0
  %2010 = vmatprep.subr.mxu0 0.0
  %2011 = vmatpush1.msra.mxu0 %v1991
  %2012 = vmatprep.subr.mxu0 0.0
  %2013 = vmatpush1.msra.mxu0 %v1992
  %2014 = vmatprep.subr.mxu0 0.0
  %2015 = vmatpush1.msra.mxu0 %v1993
  %2016 = vmatprep.subr.mxu0 0.0
  %2017 = vmatpush1.msra.mxu0 %v1994
  %2018 = vmatprep.subr.mxu0 0.0
  %2019 = vmatpush1.msra.mxu0 %v1995
  %2020 = vmatprep.subr.mxu0 0.0
  %2021 = vmatpush1.msra.mxu0 %v1996
  %2022 = vmatprep.subr.mxu0 0.0
  %2023 = vmatpush1.msra.mxu0 %v1997
  %2024 = vmatprep.subr.mxu0 0.0
  %2025 = vmatpush1.msra.mxu0 %v1998
  %2026 = vmatprep.subr.mxu0 0.0
  %2027 = vmatpush1.msra.mxu0 0.0
  %2028 = vmatprep.subr.mxu0 0.0
  %2029 = vmatpush1.msra.mxu0 0.0
  %2030 = vmatprep.subr.mxu0 0.0
  %2031 = vmatpush1.msra.mxu0 0.0
  %2032 = vmatprep.subr.mxu0 0.0
  %2033 = vmatpush1.msra.mxu0 0.0
  %2034 = vmatprep.subr.mxu0 0.0
  %2035 = vmatpush1.msra.mxu0 0.0
  %2036 = vmatprep.subr.mxu0 0.0
  %2037 = vmatpush1.msra.mxu0 0.0
  %2038 = vmatprep.subr.mxu0 0.0
  %2039 = vmatpush1.msra.mxu0 0.0
  %2040 = vmatprep.subr.mxu0 0.0
  %2041 = vmatpush1.msra.mxu0 0.0
  %2042 = vmatprep.subr.mxu0 0.0
  %2043 = vmatpush1.msra.mxu0 0.0
  %2044 = vmatprep.subr.mxu0 0.0
  %2045 = vmatpush1.msra.mxu0 0.0
  %2046 = vmatprep.subr.mxu0 0.0
  %2047 = vmatpush1.msra.mxu0 0.0
  %2048 = vmatprep.subr.mxu0 0.0
  %2049 = vmatpush1.msra.mxu0 0.0
  %2050 = vmatprep.subr.mxu0 0.0
  %2051 = vmatpush1.msra.mxu0 0.0
  %2052 = vmatprep.subr.mxu0 0.0
  %2053 = vmatpush1.msra.mxu0 0.0
  %2054 = vmatprep.subr.mxu0 0.0
  %2055 = vmatpush1.msra.mxu0 0.0
  %2056 = vmatprep.subr.mxu0 0.0
  %2057 = vmatpush1.msra.mxu0 0.0
  %2058 = vmatprep.subr.mxu0 0.0
  %2059 = vmatpush1.msra.mxu0 0.0
  %2060 = vmatprep.subr.mxu0 0.0
  %2061 = vmatpush1.msra.mxu0 0.0
  %2062 = vmatprep.subr.mxu0 0.0
  %2063 = vmatpush1.msra.mxu0 0.0
  %2064 = vmatprep.subr.mxu0 0.0
  %2065 = vmatpush1.msra.mxu0 0.0
  %2066 = vmatprep.subr.mxu0 0.0
  %2067 = vmatpush1.msra.mxu0 0.0
  %2068 = vmatprep.subr.mxu0 0.0
  %2069 = vmatpush1.msra.mxu0 0.0
  %2070 = vmatprep.subr.mxu0 0.0
  %2071 = vmatpush1.msra.mxu0 0.0
  %2072 = vmatprep.subr.mxu0 0.0
  %2073 = vmatpush1.msra.mxu0 0.0
  %2074 = vmatprep.mubr.f32.mxu0 0.0
  %2075 = vmatmul.mubr.f32.gmra.mrb[0].mxu0 %v2005
  %v2076 = vpop.f32.mrb[0].mxu0
  %v2077 = vadd.f32 %v2003, %v2076
  %v2078 = vpop.f32.mrb[0].mxu0
  %2079 = vmatprep.mubr.f32.mxu0 0.0
  %2080 = vmatmul.mubr.f32.gmra.mrb[0].mxu0 %v2008
  %v2081 = vpop.f32.mrb[0].mxu0
  %v2082 = vadd.f32 %v2003, %v2081
  %v2083 = vpop.f32.mrb[0].mxu0
  %2084 = vdwg.mxu0
  %v2085 = vadd.f32 %v1881, %v2077
  %v2086 = vadd.f32 %v1882, %v2082
  %v2087 = vsel %vm133, %v2085, 0.0
  %2088 = vadd.xlane.f32.xlu0 %v2087
  %v2089 = vpop.xlane.xlu0 %2088
  %v2090 = vsel %vm133, %v2086, 0.0
  %2091 = vadd.xlane.f32.xlu0 %v2090
  %v2092 = vpop.xlane.xlu0 %2091
  %v2093 = vmul.f32 %v2089, %v140
  %v2094 = vmul.f32 %v2092, %v140
  %v2095 = vsub.f32 %v2085, %v2093
  %v2096 = vsub.f32 %v2086, %v2094
  %v2097 = vmul.f32 %v2095, %v2095
  %v2098 = vmul.f32 %v2096, %v2096
  %v2099 = vsel %vm133, %v2097, 0.0
  %2100 = vadd.xlane.f32.xlu0 %v2099
  %v2101 = vpop.xlane.xlu0 %2100
  %v2102 = vsel %vm133, %v2098, 0.0
  %2103 = vadd.xlane.f32.xlu0 %v2102
  %v2104 = vpop.xlane.xlu0 %2103
  %v2105 = vmul.f32 %v2101, %v140
  %v2106 = vmul.f32 %v2104, %v140
  %v2107 = vadd.f32 %v2105, 1e-12
  %v2108 = vadd.f32 %v2106, 1e-12
  %v2109 = vrsqrt.pop %v2107
  %v2110 = vrsqrt.pop %v2108
  %v2111 = vmul.f32 %v2095, %v2109
  %v2112 = vmul.f32 %v2096, %v2110
  %v2113 = vld [vmem:[%s6 + $0x10] sm:$0x1]
  %v2114 = vlaneseq
  %v2115 = vshrl.u32 %v2114, 7
  %v2116 = vsub.s32 0, %v2115
  %v2117 = vrot.slane %v2113, %v2116
  %v2118 = vmul.f32 %v2111, %v2117
  %v2119 = vmul.f32 %v2112, %v2117
  %v2120 = vld [vmem:[%s6 + $0x11] sm:$0x1]
  %v2121 = vlaneseq
  %v2122 = vshrl.u32 %v2121, 7
  %v2123 = vsub.s32 0, %v2122
  %v2124 = vrot.slane %v2120, %v2123
  %v2125 = vadd.f32 %v2118, %v2124
  %v2126 = vadd.f32 %v2119, %v2124
  %v2127 = vmul.u32 %v176, 8
  %vm2128 = vcmp.eq.s32.totalorder %v29, %v2127
  %v2129 = vsel %vm2128, 1, 0
  %v2130 = vcvt.s32.f32 %v2129
  %v2132 = vsel %vm312, %v2130, 0
  %2134 = vmatprep.subr.mxu0 0.0
  %2135 = vmatpush1.msra.mxu0 %v2125
  %2136 = vmatprep.subr.mxu0 0.0
  %2137 = vmatpush1.msra.mxu0 %v2126
  %2138 = vmatprep.subr.mxu0 0.0
  %2139 = vmatpush1.msra.mxu0 0.0
  %2140 = vmatprep.subr.mxu0 0.0
  %2141 = vmatpush1.msra.mxu0 0.0
  %2142 = vmatprep.subr.mxu0 0.0
  %2143 = vmatpush1.msra.mxu0 0.0
  %2144 = vmatprep.subr.mxu0 0.0
  %2145 = vmatpush1.msra.mxu0 0.0
  %2146 = vmatprep.subr.mxu0 0.0
  %2147 = vmatpush1.msra.mxu0 0.0
  %2148 = vmatprep.subr.mxu0 0.0
  %2149 = vmatpush1.msra.mxu0 0.0
  %2150 = vmatprep.subr.mxu0 0.0
  %2151 = vmatpush1.msra.mxu0 0.0
  %2152 = vmatprep.subr.mxu0 0.0
  %2153 = vmatpush1.msra.mxu0 0.0
  %2154 = vmatprep.subr.mxu0 0.0
  %2155 = vmatpush1.msra.mxu0 0.0
  %2156 = vmatprep.subr.mxu0 0.0
  %2157 = vmatpush1.msra.mxu0 0.0
  %2158 = vmatprep.subr.mxu0 0.0
  %2159 = vmatpush1.msra.mxu0 0.0
  %2160 = vmatprep.subr.mxu0 0.0
  %2161 = vmatpush1.msra.mxu0 0.0
  %2162 = vmatprep.subr.mxu0 0.0
  %2163 = vmatpush1.msra.mxu0 0.0
  %2164 = vmatprep.subr.mxu0 0.0
  %2165 = vmatpush1.msra.mxu0 0.0
  %2166 = vmatprep.subr.mxu0 0.0
  %2167 = vmatpush1.msra.mxu0 0.0
  %2168 = vmatprep.subr.mxu0 0.0
  %2169 = vmatpush1.msra.mxu0 0.0
  %2170 = vmatprep.subr.mxu0 0.0
  %2171 = vmatpush1.msra.mxu0 0.0
  %2172 = vmatprep.subr.mxu0 0.0
  %2173 = vmatpush1.msra.mxu0 0.0
  %2174 = vmatprep.subr.mxu0 0.0
  %2175 = vmatpush1.msra.mxu0 0.0
  %2176 = vmatprep.subr.mxu0 0.0
  %2177 = vmatpush1.msra.mxu0 0.0
  %2178 = vmatprep.subr.mxu0 0.0
  %2179 = vmatpush1.msra.mxu0 0.0
  %2180 = vmatprep.subr.mxu0 0.0
  %2181 = vmatpush1.msra.mxu0 0.0
  %2182 = vmatprep.subr.mxu0 0.0
  %2183 = vmatpush1.msra.mxu0 0.0
  %2184 = vmatprep.subr.mxu0 0.0
  %2185 = vmatpush1.msra.mxu0 0.0
  %2186 = vmatprep.subr.mxu0 0.0
  %2187 = vmatpush1.msra.mxu0 0.0
  %2188 = vmatprep.subr.mxu0 0.0
  %2189 = vmatpush1.msra.mxu0 0.0
  %2190 = vmatprep.subr.mxu0 0.0
  %2191 = vmatpush1.msra.mxu0 0.0
  %2192 = vmatprep.subr.mxu0 0.0
  %2193 = vmatpush1.msra.mxu0 0.0
  %2194 = vmatprep.subr.mxu0 0.0
  %2195 = vmatpush1.msra.mxu0 0.0
  %2196 = vmatprep.subr.mxu0 0.0
  %2197 = vmatpush1.msra.mxu0 0.0
  %2198 = vmatprep.mubr.f32.mxu0 0.0
  %2199 = vmatmul.mubr.f32.gmra.mrb[0].mxu0 %v2132
  %v2200 = vpop.f32.mrb[0].mxu0
  %v2201 = vadd.f32 0.0, %v2200
  %v2202 = vpop.f32.mrb[0].mxu0
  %2203 = vdwg.mxu0
  %v2204 = vld [vmem:[%s2 + $0x108] sm:$0xff]
  %v2205 = vld [vmem:[%s2 + $0x110] sm:$0xff]
  %v2206 = vld [vmem:[%s2 + $0x118] sm:$0xff]
  %v2207 = vld [vmem:[%s2 + $0x120] sm:$0xff]
  %v2208 = vld [vmem:[%s6 + $0x12] sm:$0x1]
  %v2209 = vlaneseq
  %v2210 = vshrl.u32 %v2209, 7
  %v2211 = vsub.s32 0, %v2210
  %v2212 = vrot.slane %v2208, %v2211
  %v2214 = vsel %vm133, %v2201, 0
  %2216 = vmatprep.subr.mxu0 0.0
  %2217 = vmatpush1.msra.mxu0 %v2204
  %2218 = vmatprep.subr.mxu0 0.0
  %2219 = vmatpush1.msra.mxu0 %v2205
  %2220 = vmatprep.subr.mxu0 0.0
  %2221 = vmatpush1.msra.mxu0 %v2206
  %2222 = vmatprep.subr.mxu0 0.0
  %2223 = vmatpush1.msra.mxu0 %v2207
  %2224 = vmatprep.subr.mxu0 0.0
  %2225 = vmatpush1.msra.mxu0 0.0
  %2226 = vmatprep.subr.mxu0 0.0
  %2227 = vmatpush1.msra.mxu0 0.0
  %2228 = vmatprep.subr.mxu0 0.0
  %2229 = vmatpush1.msra.mxu0 0.0
  %2230 = vmatprep.subr.mxu0 0.0
  %2231 = vmatpush1.msra.mxu0 0.0
  %2232 = vmatprep.subr.mxu0 0.0
  %2233 = vmatpush1.msra.mxu0 0.0
  %2234 = vmatprep.subr.mxu0 0.0
  %2235 = vmatpush1.msra.mxu0 0.0
  %2236 = vmatprep.subr.mxu0 0.0
  %2237 = vmatpush1.msra.mxu0 0.0
  %2238 = vmatprep.subr.mxu0 0.0
  %2239 = vmatpush1.msra.mxu0 0.0
  %2240 = vmatprep.subr.mxu0 0.0
  %2241 = vmatpush1.msra.mxu0 0.0
  %2242 = vmatprep.subr.mxu0 0.0
  %2243 = vmatpush1.msra.mxu0 0.0
  %2244 = vmatprep.subr.mxu0 0.0
  %2245 = vmatpush1.msra.mxu0 0.0
  %2246 = vmatprep.subr.mxu0 0.0
  %2247 = vmatpush1.msra.mxu0 0.0
  %2248 = vmatprep.subr.mxu0 0.0
  %2249 = vmatpush1.msra.mxu0 0.0
  %2250 = vmatprep.subr.mxu0 0.0
  %2251 = vmatpush1.msra.mxu0 0.0
  %2252 = vmatprep.subr.mxu0 0.0
  %2253 = vmatpush1.msra.mxu0 0.0
  %2254 = vmatprep.subr.mxu0 0.0
  %2255 = vmatpush1.msra.mxu0 0.0
  %2256 = vmatprep.subr.mxu0 0.0
  %2257 = vmatpush1.msra.mxu0 0.0
  %2258 = vmatprep.subr.mxu0 0.0
  %2259 = vmatpush1.msra.mxu0 0.0
  %2260 = vmatprep.subr.mxu0 0.0
  %2261 = vmatpush1.msra.mxu0 0.0
  %2262 = vmatprep.subr.mxu0 0.0
  %2263 = vmatpush1.msra.mxu0 0.0
  %2264 = vmatprep.subr.mxu0 0.0
  %2265 = vmatpush1.msra.mxu0 0.0
  %2266 = vmatprep.subr.mxu0 0.0
  %2267 = vmatpush1.msra.mxu0 0.0
  %2268 = vmatprep.subr.mxu0 0.0
  %2269 = vmatpush1.msra.mxu0 0.0
  %2270 = vmatprep.subr.mxu0 0.0
  %2271 = vmatpush1.msra.mxu0 0.0
  %2272 = vmatprep.subr.mxu0 0.0
  %2273 = vmatpush1.msra.mxu0 0.0
  %2274 = vmatprep.subr.mxu0 0.0
  %2275 = vmatpush1.msra.mxu0 0.0
  %2276 = vmatprep.subr.mxu0 0.0
  %2277 = vmatpush1.msra.mxu0 0.0
  %2278 = vmatprep.subr.mxu0 0.0
  %2279 = vmatpush1.msra.mxu0 0.0
  %2280 = vmatprep.mubr.f32.mxu0 0.0
  %2281 = vmatmul.mubr.f32.gmra.mrb[0].mxu0 %v2214
  %v2282 = vpop.f32.mrb[0].mxu0
  %v2283 = vadd.f32 %v2212, %v2282
  %v2284 = vpop.f32.mrb[0].mxu0
  %2285 = vdwg.mxu0
  %v2286 = vtanh.pop %v2283
  %v2287 = vld [vmem:[%s5] sm:$0xff]
  %v2288 = vld [vmem:[%s5 + $0x8] sm:$0xff]
  %v2289 = vld [vmem:[%s5 + $0x10] sm:$0xff]
  %v2290 = vld [vmem:[%s5 + $0x18] sm:$0xff]
  %v2291 = vld [vmem:[%s6 + $0x13] sm:$0x1]
  %v2292 = vlaneseq
  %v2293 = vshrl.u32 %v2292, 7
  %v2294 = vsub.s32 0, %v2293
  %v2295 = vrot.slane %v2291, %v2294
  %v2297 = vsel %vm133, %v2286, 0
  %2299 = vmatprep.subr.mxu0 0.0
  %2300 = vmatpush1.msra.mxu0 %v2287
  %2301 = vmatprep.subr.mxu0 0.0
  %2302 = vmatpush1.msra.mxu0 %v2288
  %2303 = vmatprep.subr.mxu0 0.0
  %2304 = vmatpush1.msra.mxu0 %v2289
  %2305 = vmatprep.subr.mxu0 0.0
  %2306 = vmatpush1.msra.mxu0 %v2290
  %2307 = vmatprep.subr.mxu0 0.0
  %2308 = vmatpush1.msra.mxu0 0.0
  %2309 = vmatprep.subr.mxu0 0.0
  %2310 = vmatpush1.msra.mxu0 0.0
  %2311 = vmatprep.subr.mxu0 0.0
  %2312 = vmatpush1.msra.mxu0 0.0
  %2313 = vmatprep.subr.mxu0 0.0
  %2314 = vmatpush1.msra.mxu0 0.0
  %2315 = vmatprep.subr.mxu0 0.0
  %2316 = vmatpush1.msra.mxu0 0.0
  %2317 = vmatprep.subr.mxu0 0.0
  %2318 = vmatpush1.msra.mxu0 0.0
  %2319 = vmatprep.subr.mxu0 0.0
  %2320 = vmatpush1.msra.mxu0 0.0
  %2321 = vmatprep.subr.mxu0 0.0
  %2322 = vmatpush1.msra.mxu0 0.0
  %2323 = vmatprep.subr.mxu0 0.0
  %2324 = vmatpush1.msra.mxu0 0.0
  %2325 = vmatprep.subr.mxu0 0.0
  %2326 = vmatpush1.msra.mxu0 0.0
  %2327 = vmatprep.subr.mxu0 0.0
  %2328 = vmatpush1.msra.mxu0 0.0
  %2329 = vmatprep.subr.mxu0 0.0
  %2330 = vmatpush1.msra.mxu0 0.0
  %2331 = vmatprep.subr.mxu0 0.0
  %2332 = vmatpush1.msra.mxu0 0.0
  %2333 = vmatprep.subr.mxu0 0.0
  %2334 = vmatpush1.msra.mxu0 0.0
  %2335 = vmatprep.subr.mxu0 0.0
  %2336 = vmatpush1.msra.mxu0 0.0
  %2337 = vmatprep.subr.mxu0 0.0
  %2338 = vmatpush1.msra.mxu0 0.0
  %2339 = vmatprep.subr.mxu0 0.0
  %2340 = vmatpush1.msra.mxu0 0.0
  %2341 = vmatprep.subr.mxu0 0.0
  %2342 = vmatpush1.msra.mxu0 0.0
  %2343 = vmatprep.subr.mxu0 0.0
  %2344 = vmatpush1.msra.mxu0 0.0
  %2345 = vmatprep.subr.mxu0 0.0
  %2346 = vmatpush1.msra.mxu0 0.0
  %2347 = vmatprep.subr.mxu0 0.0
  %2348 = vmatpush1.msra.mxu0 0.0
  %2349 = vmatprep.subr.mxu0 0.0
  %2350 = vmatpush1.msra.mxu0 0.0
  %2351 = vmatprep.subr.mxu0 0.0
  %2352 = vmatpush1.msra.mxu0 0.0
  %2353 = vmatprep.subr.mxu0 0.0
  %2354 = vmatpush1.msra.mxu0 0.0
  %2355 = vmatprep.subr.mxu0 0.0
  %2356 = vmatpush1.msra.mxu0 0.0
  %2357 = vmatprep.subr.mxu0 0.0
  %2358 = vmatpush1.msra.mxu0 0.0
  %2359 = vmatprep.subr.mxu0 0.0
  %2360 = vmatpush1.msra.mxu0 0.0
  %2361 = vmatprep.subr.mxu0 0.0
  %2362 = vmatpush1.msra.mxu0 0.0
  %2363 = vmatprep.mubr.f32.mxu0 0.0
  %2364 = vmatmul.mubr.f32.gmra.mrb[0].mxu0 %v2297
  %v2365 = vpop.f32.mrb[0].mxu0
  %v2366 = vadd.f32 %v2295, %v2365
  %v2367 = vpop.f32.mrb[0].mxu0
  %2368 = vdwg.mxu0
  %v2369 = vmul.f32 %v2366, 0.5
  %v2370 = vtanh.pop %v2369
  %v2371 = vadd.f32 %v2370, 1.0
  %v2372 = vmul.f32 %v2371, 0.5
  %2373 = vst [vmem:[%s7] sm:$0xff] %v2372
  // Predicated region
  $region30: #{forward.1} parent=0 // pred_check
    _
  $region31: #{forward.1} parent=0 // pred_check_branch
    %2375 = sbr.rel (0) target = $region33
  $region32: #{forward.1} parent=0 // pred_region
    _
  $region33: #{forward.1} parent=0 // pred_fallthru
    _
  // Predicated region
  $region34: #{forward.1} parent=0 // pred_check
    _
  $region35: #{forward.1} parent=0 // pred_check_branch
    %2377 = sbr.rel (0) target = $region37
  $region36: #{forward.1} parent=0 // pred_region
    _
  $region37: #{forward.1} parent=0 // pred_fallthru
    _

</llo_original>
